<compile_context>
chip_gen: v7x
topology: tpu7x:2x2x1
jax: 0.10.0
libtpu: 0.0.40
codegen_flags: <defaults>
</compile_context>

<pallas_src>
import functools

import jax
import jax.numpy as jnp
from jax.experimental import pallas as pl
from jax.experimental.pallas import tpu as pltpu


_TAPS = tuple((dy, dx) for dy in (-1, 0, 1) for dx in (-1, 0, 1))
_CENTER = 4  # index of the (0, 0) tap


def _tensorcores_per_chip():
    """v7x exposes 2 TensorCores per chip; v5e/v6e have 1.  Default to 1."""
    try:
        kind = jax.devices()[0].device_kind.lower()
    except Exception:
        return 1
    return 2 if ("v7" in kind or "7x" in kind) else 1


def _our_fe_kernel(x_ref, m_ref, wb_ref, wf_ref, wfin_ref, o_ref, *, C, W):
    L = x_ref.shape[-1]                  # (images-per-step) * H * W, lane axis
    x = x_ref[0]                         # (C, L), channel-major

    m = m_ref[...]                       # (9, L) per-tap in-bounds masks
    wb = wb_ref[...]                     # (4, C, C+1) packed 1x1 weights/biases
    wfin = wfin_ref[...]                 # (dim, C+1) final conv [w/9 | bias]

    # Pre-broadcast each needed tap mask to (C, L) exactly once.
    mb = [None if t == _CENTER else jnp.broadcast_to(m[t:t + 1, :], (C, L))
          for t in range(9)]

    def shift(a, t):
        # a[:, p] -> a[:, p + off]; mask zeros destinations whose source pixel
        # is outside its image (this also kills lane-roll wrap across images).
        dy, dx = _TAPS[t]
        off = dy * W + dx
        if off == 0:
            return a
        return pltpu.roll(a, (-off) % L, axis=1) * mb[t]

    # --- three chained 1x1 conv + folded-BN + ReLU, on the VPU ---------------
    def conv1x1_relu(inp, s):
        ws = wb[s]                       # (C, C+1)
        w = ws[:, 0:C]                   # (C, C)  scale-folded weights
        b = ws[:, C:C + 1]               # (C, 1)  folded BN shift
        y = jnp.broadcast_to(b, (C, L))
        for ci in range(C):
            y = y + w[:, ci:ci + 1] * inp[ci:ci + 1, :]
        return jnp.maximum(y, 0.0)

    f1 = conv1x1_relu(x, 0)
    f2 = conv1x1_relu(f1, 1)
    f3 = conv1x1_relu(f2, 2)
    cat = jnp.concatenate([f1, f2, f3], axis=0)          # (3C, L)

    # --- 3x3 fusion conv (pad=1), shift-the-output form ----------------------
    # One MXU dot makes all nine per-tap partials; roll+mask each (C, L)
    # partial into place and accumulate.  BN scale folded into wf, shift in bf.
    parts = jnp.dot(wf_ref[...], cat,
                    preferred_element_type=jnp.float32)  # (9C, L)
    bf = wb[3, :, C:C + 1]                               # (C, 1) fusion shift
    acc = jnp.broadcast_to(bf, (C, L))
    for t in range(9):
        acc = acc + shift(parts[t * C:(t + 1) * C, :], t)
    fused = jnp.maximum(acc, 0.0)                        # (C, L)

    # --- separable 3x3 avg pool (stride 1, pad 1, count_include_pad=True) ----
    # 1/9 is folded into wfin.  Taps 3/5 = (0,-1)/(0,1); taps 1/7 = (-1,0)/(1,0).
    h = fused + shift(fused, 3) + shift(fused, 5)
    pool = h + shift(h, 1) + shift(h, 7)                 # un-normalized

    # --- final 1x1 conv to dim ------------------------------------------------
    out = jnp.dot(wfin[:, 0:C], pool, preferred_element_type=jnp.float32)
    o_ref[0] = out + wfin[:, C:C + 1]                    # (dim, L)


def our_fe_pallas(x_nchw, P):
    x = x_nchw.astype(jnp.float32)
    N, C, H, W = x.shape
    HW = H * W
    dim = P['wfin'].shape[1]

    # ---- batch/grid strategy -------------------------------------------------
    # Single-TC chips (v5e/v6e): fold the whole batch into lanes, one grid
    # step.  v7x (2 TCs): keep a per-image "parallel" grid so both cores work.
    n_tc = _tensorcores_per_chip()
    if n_tc > 1 and N % n_tc == 0:
        G = n_tc
    elif n_tc > 1:
        G = N
    else:
        G = 1
    ipg = N // G                                   # images folded per grid step
    L = ipg * HW

    x_grp = (x.reshape(G, ipg, C, HW)
              .transpose(0, 2, 1, 3)
              .reshape(G, C, L))                   # tiny wrapper-side relayout

    # ---- host-side parameter folding ------------------------------------------
    def fold(w, a):                                # w (Cin,Cout), a (2,Cout)
        return (w * a[0][None, :]).T, a[1]         # (Cout,Cin), (Cout,)

    # wb slab: stages 0..2 = [w_i | b_i] of the 1x1 chain; stage 3 col C holds
    # the fusion conv's folded BN shift (packs the last stray bias vector).
    wb = jnp.zeros((4, C, C + 1), jnp.float32)
    for s, (wk, ak) in enumerate((('w1', 'a1'), ('w2', 'a2'), ('w3', 'a3'))):
        w_s, b_s = fold(P[wk], P[ak])
        wb = wb.at[s, :, :C].set(w_s)
        wb = wb.at[s, :, C].set(b_s)
    wb = wb.at[3, :, C].set(P['af'][1])

    # Fusion weight HWIO (3,3,3C,C) -> (9C, 3C), rows grouped tap-major /
    # cout-minor, BN scale folded per output-channel row.
    wf_stk = jnp.transpose(P['wf'], (0, 1, 3, 2)).reshape(9 * C, 3 * C)
    wf_stk = wf_stk * jnp.tile(P['af'][0], 9)[:, None]

    # Final conv: 1/9 pool factor folded into the weight; bias in last column.
    wfinb = jnp.concatenate(
        [P['wfin'].T / 9.0, P['bfin'].reshape(dim, 1)], axis=1)   # (dim, C+1)

    # Per-tap in-bounds masks (corner products done host-side), tiled per image.
    yy = jnp.repeat(jnp.arange(H), W)
    xx = jnp.tile(jnp.arange(W), H)
    rows = [((yy + dy >= 0) & (yy + dy < H) & (xx + dx >= 0) & (xx + dx < W))
            for dy in (-1, 0, 1) for dx in (-1, 0, 1)]
    masks = jnp.tile(jnp.stack(rows).astype(jnp.float32), (1, ipg))  # (9, L)

    kernel = functools.partial(_our_fe_kernel, C=C, W=W)

    grid_spec = pltpu.PrefetchScalarGridSpec(
        num_scalar_prefetch=0,
        grid=(G,),
        in_specs=[
            pl.BlockSpec((1, C, L), lambda g: (g, 0, 0)),
            pl.BlockSpec((9, L), lambda g: (0, 0)),
            pl.BlockSpec((4, C, C + 1), lambda g: (0, 0, 0)),
            pl.BlockSpec((9 * C, 3 * C), lambda g: (0, 0)),
            pl.BlockSpec((dim, C + 1), lambda g: (0, 0)),
        ],
        out_specs=pl.BlockSpec((1, dim, L), lambda g: (g, 0, 0)),
    )

    flops = N * HW * (3 * 2 * C * C              # 1x1 chain (VPU)
                      + 2 * (9 * C) * (3 * C)    # fusion partials dot
                      + 9 * 3 * C                # roll/mask/accumulate
                      + 4 * C                    # separable pool adds
                      + 2 * dim * C)             # final conv
    bytes_accessed = 4 * (N * C * HW + N * dim * HW + 9 * N * HW
                          + wb.size + wf_stk.size + wfinb.size)

    out = pl.pallas_call(
        kernel,
        out_shape=jax.ShapeDtypeStruct((G, dim, L), jnp.float32),
        grid_spec=grid_spec,
        compiler_params=pltpu.CompilerParams(
            dimension_semantics=("parallel",),
            vmem_limit_bytes=32 * 1024 * 1024),
        cost_estimate=pl.CostEstimate(
            flops=flops, transcendentals=0, bytes_accessed=bytes_accessed),
    )(x_grp, masks, wb, wf_stk, wfinb)

    return (out.reshape(G, dim, ipg, HW)
               .transpose(0, 2, 1, 3)
               .reshape(N, dim, H, W))


def our_fe_reference(x_nchw, P):
    """Pure-JAX reference (lax convs / reduce_window) for validation."""
    x = jnp.transpose(x_nchw, (0, 2, 3, 1)).astype(jnp.float32)

    def conv1x1(inp, w):
        return jnp.einsum('nhwc,cd->nhwd', inp, w)

    def bn_relu(y, a):
        return jnp.maximum(y * a[0] + a[1], 0.0)

    f1 = bn_relu(conv1x1(x, P['w1']), P['a1'])
    f2 = bn_relu(conv1x1(f1, P['w2']), P['a2'])
    f3 = bn_relu(conv1x1(f2, P['w3']), P['a3'])
    cat = jnp.concatenate([f1, f2, f3], axis=-1)
    fused = jax.lax.conv_general_dilated(
        cat, P['wf'], (1, 1), 'SAME',
        dimension_numbers=('NHWC', 'HWIO', 'NHWC'))
    fused = bn_relu(fused, P['af'])
    pooled = jax.lax.reduce_window(
        fused, 0.0, jax.lax.add, (1, 3, 3, 1), (1, 1, 1, 1),
        padding=((0, 0), (1, 1), (1, 1), (0, 0))) / 9.0
    out = jnp.einsum('nhwc,cd->nhwd', pooled, P['wfin']) + P['bfin'][0]
    return jnp.transpose(out, (0, 3, 1, 2))


def make_params(key, channel, dim):
    """Deterministic synthetic parameters (BN folded into scale/shift)."""
    keys = iter(jax.random.split(key, 32))

    def conv_bn(cin, cout):
        w = (jax.random.normal(next(keys), (cin, cout)) * 0.2).astype(jnp.float32)
        bias = (jax.random.normal(next(keys), (cout,)) * 0.1).astype(jnp.float32)
        gamma = jax.random.uniform(next(keys), (cout,), minval=0.5, maxval=1.5)
        beta = jax.random.normal(next(keys), (cout,)) * 0.1
        mean = jax.random.normal(next(keys), (cout,)) * 0.1
        var = jax.random.uniform(next(keys), (cout,), minval=0.5, maxval=1.5)
        scale = gamma / jnp.sqrt(var + 1e-5)
        shift = beta + scale * (bias - mean)
        return w, jnp.stack([scale, shift]).astype(jnp.float32)

    C = channel
    w1, a1 = conv_bn(C, C)
    w2, a2 = conv_bn(C, C)
    w3, a3 = conv_bn(C, C)
    wf = (jax.random.normal(next(keys), (3, 3, 3 * C, C)) * 0.1).astype(jnp.float32)
    _, af = conv_bn(3 * C, C)          # (unused w) -> fusion BN+bias affine
    wfin = (jax.random.normal(next(keys), (C, dim)) * 0.2).astype(jnp.float32)
    bfin = (jax.random.normal(next(keys), (1, dim)) * 0.1).astype(jnp.float32)
    return dict(w1=w1, a1=a1, w2=w2, a2=a2, w3=w3, a3=a3,
                wf=wf, af=af, wfin=wfin, bfin=bfin)


if __name__ == "__main__":
    channel, dim = 4, 32
    N, H, W = 2, 16, 16

    key = jax.random.PRNGKey(0)
    kx, kp = jax.random.split(key)
    x = jax.random.normal(kx, (N, channel, H, W), dtype=jnp.float32)  # NCHW
    params = make_params(kp, channel, dim)

    out = our_fe_pallas(x, params)
    jax.block_until_ready(out)

    ref = our_fe_reference(x, params)
    assert out.shape == (N, dim, H, W), out.shape
    assert jnp.allclose(out, ref, atol=1e-3, rtol=1e-3), "mismatch vs reference"

    print("KERNEL_OK")
</pallas_src>

<mosaic_0001>
module attributes {stable_mosaic.version = 11 : i64} {
  func.func @_our_fe_kernel(%arg0: i32, %arg1: memref<1x4x512xf32, #tpu.memory_space<vmem>>, %arg2: memref<9x512xf32, #tpu.memory_space<vmem>>, %arg3: memref<4x4x5xf32, #tpu.memory_space<vmem>>, %arg4: memref<36x12xf32, #tpu.memory_space<vmem>>, %arg5: memref<32x5xf32, #tpu.memory_space<vmem>>, %arg6: memref<1x32x512xf32, #tpu.memory_space<vmem>>) attributes {dimension_semantics = [#tpu.dimension_semantics<parallel>], iteration_bounds = array<i64: 1>, scalar_prefetch = 0 : i64, scratch_operands = 0 : i64, tpu.core_type = #tpu.core_type<tc>, window_params = [{transform_indices = @transform_0, window_bounds = array<i64: 1, 4, 512>}, {pipeline_mode = #tpu.pipeline_mode<synchronous>, transform_indices = @transform_1, window_bounds = array<i64: 9, 512>}, {pipeline_mode = #tpu.pipeline_mode<synchronous>, transform_indices = @transform_2, window_bounds = array<i64: 4, 4, 5>}, {pipeline_mode = #tpu.pipeline_mode<synchronous>, transform_indices = @transform_3, window_bounds = array<i64: 36, 12>}, {pipeline_mode = #tpu.pipeline_mode<synchronous>, transform_indices = @transform_4, window_bounds = array<i64: 32, 5>}, {transform_indices = @transform_5, window_bounds = array<i64: 1, 32, 512>}]} {
    %c0 = arith.constant 0 : index
    %c0_0 = arith.constant 0 : index
    %c0_1 = arith.constant 0 : index
    %0 = vector.load %arg1[%c0, %c0_0, %c0_1] : memref<1x4x512xf32, #tpu.memory_space<vmem>>, vector<1x4x512xf32>
    %1 = vector.shape_cast %0 : vector<1x4x512xf32> to vector<4x512xf32>
    %c0_2 = arith.constant 0 : index
    %c0_3 = arith.constant 0 : index
    %2 = vector.load %arg2[%c0_2, %c0_3] : memref<9x512xf32, #tpu.memory_space<vmem>>, vector<9x512xf32>
    %c0_4 = arith.constant 0 : index
    %c0_5 = arith.constant 0 : index
    %c0_6 = arith.constant 0 : index
    %3 = vector.load %arg3[%c0_4, %c0_5, %c0_6] : memref<4x4x5xf32, #tpu.memory_space<vmem>>, vector<4x4x5xf32>
    %c0_7 = arith.constant 0 : index
    %c0_8 = arith.constant 0 : index
    %4 = vector.load %arg5[%c0_7, %c0_8] : memref<32x5xf32, #tpu.memory_space<vmem>>, vector<32x5xf32>
    %5 = vector.extract_strided_slice %2 {offsets = [0, 0], sizes = [1, 512], strides = [1, 1]} : vector<9x512xf32> to vector<1x512xf32>
    %6 = vector.shape_cast %5 : vector<1x512xf32> to vector<1x512xf32>
    %7 = vector.broadcast %6 : vector<1x512xf32> to vector<4x512xf32>
    %8 = vector.extract_strided_slice %2 {offsets = [1, 0], sizes = [1, 512], strides = [1, 1]} : vector<9x512xf32> to vector<1x512xf32>
    %9 = vector.shape_cast %8 : vector<1x512xf32> to vector<1x512xf32>
    %10 = vector.broadcast %9 : vector<1x512xf32> to vector<4x512xf32>
    %11 = vector.extract_strided_slice %2 {offsets = [2, 0], sizes = [1, 512], strides = [1, 1]} : vector<9x512xf32> to vector<1x512xf32>
    %12 = vector.shape_cast %11 : vector<1x512xf32> to vector<1x512xf32>
    %13 = vector.broadcast %12 : vector<1x512xf32> to vector<4x512xf32>
    %14 = vector.extract_strided_slice %2 {offsets = [3, 0], sizes = [1, 512], strides = [1, 1]} : vector<9x512xf32> to vector<1x512xf32>
    %15 = vector.shape_cast %14 : vector<1x512xf32> to vector<1x512xf32>
    %16 = vector.broadcast %15 : vector<1x512xf32> to vector<4x512xf32>
    %17 = vector.extract_strided_slice %2 {offsets = [5, 0], sizes = [1, 512], strides = [1, 1]} : vector<9x512xf32> to vector<1x512xf32>
    %18 = vector.shape_cast %17 : vector<1x512xf32> to vector<1x512xf32>
    %19 = vector.broadcast %18 : vector<1x512xf32> to vector<4x512xf32>
    %20 = vector.extract_strided_slice %2 {offsets = [6, 0], sizes = [1, 512], strides = [1, 1]} : vector<9x512xf32> to vector<1x512xf32>
    %21 = vector.shape_cast %20 : vector<1x512xf32> to vector<1x512xf32>
    %22 = vector.broadcast %21 : vector<1x512xf32> to vector<4x512xf32>
    %23 = vector.extract_strided_slice %2 {offsets = [7, 0], sizes = [1, 512], strides = [1, 1]} : vector<9x512xf32> to vector<1x512xf32>
    %24 = vector.shape_cast %23 : vector<1x512xf32> to vector<1x512xf32>
    %25 = vector.broadcast %24 : vector<1x512xf32> to vector<4x512xf32>
    %26 = vector.extract_strided_slice %2 {offsets = [8, 0], sizes = [1, 512], strides = [1, 1]} : vector<9x512xf32> to vector<1x512xf32>
    %27 = vector.shape_cast %26 : vector<1x512xf32> to vector<1x512xf32>
    %28 = vector.broadcast %27 : vector<1x512xf32> to vector<4x512xf32>
    %29 = vector.extract_strided_slice %3 {offsets = [0, 0, 0], sizes = [1, 4, 5], strides = [1, 1, 1]} : vector<4x4x5xf32> to vector<1x4x5xf32>
    %30 = vector.shape_cast %29 : vector<1x4x5xf32> to vector<4x5xf32>
    %31 = vector.extract_strided_slice %30 {offsets = [0, 0], sizes = [4, 4], strides = [1, 1]} : vector<4x5xf32> to vector<4x4xf32>
    %32 = vector.extract_strided_slice %30 {offsets = [0, 4], sizes = [4, 1], strides = [1, 1]} : vector<4x5xf32> to vector<4x1xf32>
    %33 = vector.shape_cast %32 : vector<4x1xf32> to vector<4x1xf32>
    %34 = vector.broadcast %33 : vector<4x1xf32> to vector<4x512xf32>
    %35 = vector.extract_strided_slice %31 {offsets = [0, 0], sizes = [4, 1], strides = [1, 1]} : vector<4x4xf32> to vector<4x1xf32>
    %36 = vector.extract_strided_slice %1 {offsets = [0, 0], sizes = [1, 512], strides = [1, 1]} : vector<4x512xf32> to vector<1x512xf32>
    %37 = vector.broadcast %35 : vector<4x1xf32> to vector<4x512xf32>
    %38 = vector.broadcast %36 : vector<1x512xf32> to vector<4x512xf32>
    %39 = arith.mulf %37, %38 : vector<4x512xf32>
    %40 = arith.addf %34, %39 : vector<4x512xf32>
    %41 = vector.extract_strided_slice %31 {offsets = [0, 1], sizes = [4, 1], strides = [1, 1]} : vector<4x4xf32> to vector<4x1xf32>
    %42 = vector.extract_strided_slice %1 {offsets = [1, 0], sizes = [1, 512], strides = [1, 1]} : vector<4x512xf32> to vector<1x512xf32>
    %43 = vector.broadcast %41 : vector<4x1xf32> to vector<4x512xf32>
    %44 = vector.broadcast %42 : vector<1x512xf32> to vector<4x512xf32>
    %45 = arith.mulf %43, %44 : vector<4x512xf32>
    %46 = arith.addf %40, %45 : vector<4x512xf32>
    %47 = vector.extract_strided_slice %31 {offsets = [0, 2], sizes = [4, 1], strides = [1, 1]} : vector<4x4xf32> to vector<4x1xf32>
    %48 = vector.extract_strided_slice %1 {offsets = [2, 0], sizes = [1, 512], strides = [1, 1]} : vector<4x512xf32> to vector<1x512xf32>
    %49 = vector.broadcast %47 : vector<4x1xf32> to vector<4x512xf32>
    %50 = vector.broadcast %48 : vector<1x512xf32> to vector<4x512xf32>
    %51 = arith.mulf %49, %50 : vector<4x512xf32>
    %52 = arith.addf %46, %51 : vector<4x512xf32>
    %53 = vector.extract_strided_slice %31 {offsets = [0, 3], sizes = [4, 1], strides = [1, 1]} : vector<4x4xf32> to vector<4x1xf32>
    %54 = vector.extract_strided_slice %1 {offsets = [3, 0], sizes = [1, 512], strides = [1, 1]} : vector<4x512xf32> to vector<1x512xf32>
    %55 = vector.broadcast %53 : vector<4x1xf32> to vector<4x512xf32>
    %56 = vector.broadcast %54 : vector<1x512xf32> to vector<4x512xf32>
    %57 = arith.mulf %55, %56 : vector<4x512xf32>
    %58 = arith.addf %52, %57 : vector<4x512xf32>
    %cst = arith.constant 0.000000e+00 : f32
    %59 = vector.broadcast %cst : f32 to vector<4x512xf32>
    %60 = arith.maximumf %58, %59 : vector<4x512xf32>
    %61 = vector.extract_strided_slice %3 {offsets = [1, 0, 0], sizes = [1, 4, 5], strides = [1, 1, 1]} : vector<4x4x5xf32> to vector<1x4x5xf32>
    %62 = vector.shape_cast %61 : vector<1x4x5xf32> to vector<4x5xf32>
    %63 = vector.extract_strided_slice %62 {offsets = [0, 0], sizes = [4, 4], strides = [1, 1]} : vector<4x5xf32> to vector<4x4xf32>
    %64 = vector.extract_strided_slice %62 {offsets = [0, 4], sizes = [4, 1], strides = [1, 1]} : vector<4x5xf32> to vector<4x1xf32>
    %65 = vector.shape_cast %64 : vector<4x1xf32> to vector<4x1xf32>
    %66 = vector.broadcast %65 : vector<4x1xf32> to vector<4x512xf32>
    %67 = vector.extract_strided_slice %63 {offsets = [0, 0], sizes = [4, 1], strides = [1, 1]} : vector<4x4xf32> to vector<4x1xf32>
    %68 = vector.extract_strided_slice %60 {offsets = [0, 0], sizes = [1, 512], strides = [1, 1]} : vector<4x512xf32> to vector<1x512xf32>
    %69 = vector.broadcast %67 : vector<4x1xf32> to vector<4x512xf32>
    %70 = vector.broadcast %68 : vector<1x512xf32> to vector<4x512xf32>
    %71 = arith.mulf %69, %70 : vector<4x512xf32>
    %72 = arith.addf %66, %71 : vector<4x512xf32>
    %73 = vector.extract_strided_slice %63 {offsets = [0, 1], sizes = [4, 1], strides = [1, 1]} : vector<4x4xf32> to vector<4x1xf32>
    %74 = vector.extract_strided_slice %60 {offsets = [1, 0], sizes = [1, 512], strides = [1, 1]} : vector<4x512xf32> to vector<1x512xf32>
    %75 = vector.broadcast %73 : vector<4x1xf32> to vector<4x512xf32>
    %76 = vector.broadcast %74 : vector<1x512xf32> to vector<4x512xf32>
    %77 = arith.mulf %75, %76 : vector<4x512xf32>
    %78 = arith.addf %72, %77 : vector<4x512xf32>
    %79 = vector.extract_strided_slice %63 {offsets = [0, 2], sizes = [4, 1], strides = [1, 1]} : vector<4x4xf32> to vector<4x1xf32>
    %80 = vector.extract_strided_slice %60 {offsets = [2, 0], sizes = [1, 512], strides = [1, 1]} : vector<4x512xf32> to vector<1x512xf32>
    %81 = vector.broadcast %79 : vector<4x1xf32> to vector<4x512xf32>
    %82 = vector.broadcast %80 : vector<1x512xf32> to vector<4x512xf32>
    %83 = arith.mulf %81, %82 : vector<4x512xf32>
    %84 = arith.addf %78, %83 : vector<4x512xf32>
    %85 = vector.extract_strided_slice %63 {offsets = [0, 3], sizes = [4, 1], strides = [1, 1]} : vector<4x4xf32> to vector<4x1xf32>
    %86 = vector.extract_strided_slice %60 {offsets = [3, 0], sizes = [1, 512], strides = [1, 1]} : vector<4x512xf32> to vector<1x512xf32>
    %87 = vector.broadcast %85 : vector<4x1xf32> to vector<4x512xf32>
    %88 = vector.broadcast %86 : vector<1x512xf32> to vector<4x512xf32>
    %89 = arith.mulf %87, %88 : vector<4x512xf32>
    %90 = arith.addf %84, %89 : vector<4x512xf32>
    %cst_9 = arith.constant 0.000000e+00 : f32
    %91 = vector.broadcast %cst_9 : f32 to vector<4x512xf32>
    %92 = arith.maximumf %90, %91 : vector<4x512xf32>
    %93 = vector.extract_strided_slice %3 {offsets = [2, 0, 0], sizes = [1, 4, 5], strides = [1, 1, 1]} : vector<4x4x5xf32> to vector<1x4x5xf32>
    %94 = vector.shape_cast %93 : vector<1x4x5xf32> to vector<4x5xf32>
    %95 = vector.extract_strided_slice %94 {offsets = [0, 0], sizes = [4, 4], strides = [1, 1]} : vector<4x5xf32> to vector<4x4xf32>
    %96 = vector.extract_strided_slice %94 {offsets = [0, 4], sizes = [4, 1], strides = [1, 1]} : vector<4x5xf32> to vector<4x1xf32>
    %97 = vector.shape_cast %96 : vector<4x1xf32> to vector<4x1xf32>
    %98 = vector.broadcast %97 : vector<4x1xf32> to vector<4x512xf32>
    %99 = vector.extract_strided_slice %95 {offsets = [0, 0], sizes = [4, 1], strides = [1, 1]} : vector<4x4xf32> to vector<4x1xf32>
    %100 = vector.extract_strided_slice %92 {offsets = [0, 0], sizes = [1, 512], strides = [1, 1]} : vector<4x512xf32> to vector<1x512xf32>
    %101 = vector.broadcast %99 : vector<4x1xf32> to vector<4x512xf32>
    %102 = vector.broadcast %100 : vector<1x512xf32> to vector<4x512xf32>
    %103 = arith.mulf %101, %102 : vector<4x512xf32>
    %104 = arith.addf %98, %103 : vector<4x512xf32>
    %105 = vector.extract_strided_slice %95 {offsets = [0, 1], sizes = [4, 1], strides = [1, 1]} : vector<4x4xf32> to vector<4x1xf32>
    %106 = vector.extract_strided_slice %92 {offsets = [1, 0], sizes = [1, 512], strides = [1, 1]} : vector<4x512xf32> to vector<1x512xf32>
    %107 = vector.broadcast %105 : vector<4x1xf32> to vector<4x512xf32>
    %108 = vector.broadcast %106 : vector<1x512xf32> to vector<4x512xf32>
    %109 = arith.mulf %107, %108 : vector<4x512xf32>
    %110 = arith.addf %104, %109 : vector<4x512xf32>
    %111 = vector.extract_strided_slice %95 {offsets = [0, 2], sizes = [4, 1], strides = [1, 1]} : vector<4x4xf32> to vector<4x1xf32>
    %112 = vector.extract_strided_slice %92 {offsets = [2, 0], sizes = [1, 512], strides = [1, 1]} : vector<4x512xf32> to vector<1x512xf32>
    %113 = vector.broadcast %111 : vector<4x1xf32> to vector<4x512xf32>
    %114 = vector.broadcast %112 : vector<1x512xf32> to vector<4x512xf32>
    %115 = arith.mulf %113, %114 : vector<4x512xf32>
    %116 = arith.addf %110, %115 : vector<4x512xf32>
    %117 = vector.extract_strided_slice %95 {offsets = [0, 3], sizes = [4, 1], strides = [1, 1]} : vector<4x4xf32> to vector<4x1xf32>
    %118 = vector.extract_strided_slice %92 {offsets = [3, 0], sizes = [1, 512], strides = [1, 1]} : vector<4x512xf32> to vector<1x512xf32>
    %119 = vector.broadcast %117 : vector<4x1xf32> to vector<4x512xf32>
    %120 = vector.broadcast %118 : vector<1x512xf32> to vector<4x512xf32>
    %121 = arith.mulf %119, %120 : vector<4x512xf32>
    %122 = arith.addf %116, %121 : vector<4x512xf32>
    %cst_10 = arith.constant 0.000000e+00 : f32
    %123 = vector.broadcast %cst_10 : f32 to vector<4x512xf32>
    %124 = arith.maximumf %122, %123 : vector<4x512xf32>
    %125 = tpu.concatenate %60, %92, %124 in 0 : vector<4x512xf32>, vector<4x512xf32>, vector<4x512xf32> -> vector<12x512xf32>
    %c0_11 = arith.constant 0 : index
    %c0_12 = arith.constant 0 : index
    %126 = vector.load %arg4[%c0_11, %c0_12] : memref<36x12xf32, #tpu.memory_space<vmem>>, vector<36x12xf32>
    %cst_13 = arith.constant dense<0.000000e+00> : vector<36x512xf32>
    %127 = tpu.matmul %126, %125, %cst_13 {dimension_numbers = #tpu.dot_dimension_numbers<[1], [0], [0], [1], [0, 0, 1, 1], [], []>} : vector<36x12xf32>, vector<12x512xf32>, vector<36x512xf32> -> vector<36x512xf32>
    %128 = vector.extract_strided_slice %3 {offsets = [3, 0, 4], sizes = [1, 4, 1], strides = [1, 1, 1]} : vector<4x4x5xf32> to vector<1x4x1xf32>
    %129 = vector.shape_cast %128 : vector<1x4x1xf32> to vector<4x1xf32>
    %130 = vector.shape_cast %129 : vector<4x1xf32> to vector<4x1xf32>
    %131 = vector.broadcast %130 : vector<4x1xf32> to vector<4x512xf32>
    %132 = vector.extract_strided_slice %127 {offsets = [0, 0], sizes = [4, 512], strides = [1, 1]} : vector<36x512xf32> to vector<4x512xf32>
    %c17_i32 = arith.constant 17 : i32
    %133 = tpu.dynamic_rotate %132 by %c17_i32 dim 1 : vector<4x512xf32>, i32 -> vector<4x512xf32>
    %134 = arith.mulf %133, %7 : vector<4x512xf32>
    %135 = arith.addf %131, %134 : vector<4x512xf32>
    %136 = vector.extract_strided_slice %127 {offsets = [4, 0], sizes = [4, 512], strides = [1, 1]} : vector<36x512xf32> to vector<4x512xf32>
    %c16_i32 = arith.constant 16 : i32
    %137 = tpu.dynamic_rotate %136 by %c16_i32 dim 1 : vector<4x512xf32>, i32 -> vector<4x512xf32>
    %138 = arith.mulf %137, %10 : vector<4x512xf32>
    %139 = arith.addf %135, %138 : vector<4x512xf32>
    %140 = vector.extract_strided_slice %127 {offsets = [8, 0], sizes = [4, 512], strides = [1, 1]} : vector<36x512xf32> to vector<4x512xf32>
    %c15_i32 = arith.constant 15 : i32
    %141 = tpu.dynamic_rotate %140 by %c15_i32 dim 1 : vector<4x512xf32>, i32 -> vector<4x512xf32>
    %142 = arith.mulf %141, %13 : vector<4x512xf32>
    %143 = arith.addf %139, %142 : vector<4x512xf32>
    %144 = vector.extract_strided_slice %127 {offsets = [12, 0], sizes = [4, 512], strides = [1, 1]} : vector<36x512xf32> to vector<4x512xf32>
    %c1_i32 = arith.constant 1 : i32
    %145 = tpu.dynamic_rotate %144 by %c1_i32 dim 1 : vector<4x512xf32>, i32 -> vector<4x512xf32>
    %146 = arith.mulf %145, %16 : vector<4x512xf32>
    %147 = arith.addf %143, %146 : vector<4x512xf32>
    %148 = vector.extract_strided_slice %127 {offsets = [16, 0], sizes = [4, 512], strides = [1, 1]} : vector<36x512xf32> to vector<4x512xf32>
    %149 = arith.addf %147, %148 : vector<4x512xf32>
    %150 = vector.extract_strided_slice %127 {offsets = [20, 0], sizes = [4, 512], strides = [1, 1]} : vector<36x512xf32> to vector<4x512xf32>
    %c511_i32 = arith.constant 511 : i32
    %151 = tpu.dynamic_rotate %150 by %c511_i32 dim 1 : vector<4x512xf32>, i32 -> vector<4x512xf32>
    %152 = arith.mulf %151, %19 : vector<4x512xf32>
    %153 = arith.addf %149, %152 : vector<4x512xf32>
    %154 = vector.extract_strided_slice %127 {offsets = [24, 0], sizes = [4, 512], strides = [1, 1]} : vector<36x512xf32> to vector<4x512xf32>
    %c497_i32 = arith.constant 497 : i32
    %155 = tpu.dynamic_rotate %154 by %c497_i32 dim 1 : vector<4x512xf32>, i32 -> vector<4x512xf32>
    %156 = arith.mulf %155, %22 : vector<4x512xf32>
    %157 = arith.addf %153, %156 : vector<4x512xf32>
    %158 = vector.extract_strided_slice %127 {offsets = [28, 0], sizes = [4, 512], strides = [1, 1]} : vector<36x512xf32> to vector<4x512xf32>
    %c496_i32 = arith.constant 496 : i32
    %159 = tpu.dynamic_rotate %158 by %c496_i32 dim 1 : vector<4x512xf32>, i32 -> vector<4x512xf32>
    %160 = arith.mulf %159, %25 : vector<4x512xf32>
    %161 = arith.addf %157, %160 : vector<4x512xf32>
    %162 = vector.extract_strided_slice %127 {offsets = [32, 0], sizes = [4, 512], strides = [1, 1]} : vector<36x512xf32> to vector<4x512xf32>
    %c495_i32 = arith.constant 495 : i32
    %163 = tpu.dynamic_rotate %162 by %c495_i32 dim 1 : vector<4x512xf32>, i32 -> vector<4x512xf32>
    %164 = arith.mulf %163, %28 : vector<4x512xf32>
    %165 = arith.addf %161, %164 : vector<4x512xf32>
    %cst_14 = arith.constant 0.000000e+00 : f32
    %166 = vector.broadcast %cst_14 : f32 to vector<4x512xf32>
    %167 = arith.maximumf %165, %166 : vector<4x512xf32>
    %c1_i32_15 = arith.constant 1 : i32
    %168 = tpu.dynamic_rotate %167 by %c1_i32_15 dim 1 : vector<4x512xf32>, i32 -> vector<4x512xf32>
    %169 = arith.mulf %168, %16 : vector<4x512xf32>
    %170 = arith.addf %167, %169 : vector<4x512xf32>
    %c511_i32_16 = arith.constant 511 : i32
    %171 = tpu.dynamic_rotate %167 by %c511_i32_16 dim 1 : vector<4x512xf32>, i32 -> vector<4x512xf32>
    %172 = arith.mulf %171, %19 : vector<4x512xf32>
    %173 = arith.addf %170, %172 : vector<4x512xf32>
    %c16_i32_17 = arith.constant 16 : i32
    %174 = tpu.dynamic_rotate %173 by %c16_i32_17 dim 1 : vector<4x512xf32>, i32 -> vector<4x512xf32>
    %175 = arith.mulf %174, %10 : vector<4x512xf32>
    %176 = arith.addf %173, %175 : vector<4x512xf32>
    %c496_i32_18 = arith.constant 496 : i32
    %177 = tpu.dynamic_rotate %173 by %c496_i32_18 dim 1 : vector<4x512xf32>, i32 -> vector<4x512xf32>
    %178 = arith.mulf %177, %25 : vector<4x512xf32>
    %179 = arith.addf %176, %178 : vector<4x512xf32>
    %180 = vector.extract_strided_slice %4 {offsets = [0, 0], sizes = [32, 4], strides = [1, 1]} : vector<32x5xf32> to vector<32x4xf32>
    %cst_19 = arith.constant dense<0.000000e+00> : vector<32x512xf32>
    %181 = tpu.matmul %180, %179, %cst_19 {dimension_numbers = #tpu.dot_dimension_numbers<[1], [0], [0], [1], [0, 0, 1, 1], [], []>} : vector<32x4xf32>, vector<4x512xf32>, vector<32x512xf32> -> vector<32x512xf32>
    %182 = vector.extract_strided_slice %4 {offsets = [0, 4], sizes = [32, 1], strides = [1, 1]} : vector<32x5xf32> to vector<32x1xf32>
    %183 = vector.broadcast %182 : vector<32x1xf32> to vector<32x512xf32>
    %184 = arith.addf %181, %183 : vector<32x512xf32>
    %c0_20 = arith.constant 0 : index
    %c0_21 = arith.constant 0 : index
    %c0_22 = arith.constant 0 : index
    %185 = vector.load %arg6[%c0_20, %c0_21, %c0_22] : memref<1x32x512xf32, #tpu.memory_space<vmem>>, vector<1x32x512xf32>
    %186 = vector.shape_cast %185 : vector<1x32x512xf32> to vector<32x512xf32>
    %187 = vector.shape_cast %184 : vector<32x512xf32> to vector<1x32x512xf32>
    tpu.vector_store %arg6[%c0_20, %c0_21, %c0_22], %187 {strides = array<i32>} : memref<1x32x512xf32, #tpu.memory_space<vmem>>, vector<1x32x512xf32>,
    return
  }
  func.func @transform_0(%arg0: i32) -> (i32, i32, i32) {
    %c0_i32 = arith.constant 0 : i32
    %c0_i32_0 = arith.constant 0 : i32
    %c0_i32_1 = arith.constant 0 : i32
    return %arg0, %c0_i32, %c0_i32_0 : i32, i32, i32
  }
  func.func @transform_1(%arg0: i32) -> (i32, i32) {
    %c0_i32 = arith.constant 0 : i32
    %c0_i32_0 = arith.constant 0 : i32
    %c0_i32_1 = arith.constant 0 : i32
    return %c0_i32, %c0_i32_0 : i32, i32
  }
  func.func @transform_2(%arg0: i32) -> (i32, i32, i32) {
    %c0_i32 = arith.constant 0 : i32
    %c0_i32_0 = arith.constant 0 : i32
    %c0_i32_1 = arith.constant 0 : i32
    %c0_i32_2 = arith.constant 0 : i32
    return %c0_i32, %c0_i32_0, %c0_i32_1 : i32, i32, i32
  }
  func.func @transform_3(%arg0: i32) -> (i32, i32) {
    %c0_i32 = arith.constant 0 : i32
    %c0_i32_0 = arith.constant 0 : i32
    %c0_i32_1 = arith.constant 0 : i32
    return %c0_i32, %c0_i32_0 : i32, i32
  }
  func.func @transform_4(%arg0: i32) -> (i32, i32) {
    %c0_i32 = arith.constant 0 : i32
    %c0_i32_0 = arith.constant 0 : i32
    %c0_i32_1 = arith.constant 0 : i32
    return %c0_i32, %c0_i32_0 : i32, i32
  }
  func.func @transform_5(%arg0: i32) -> (i32, i32, i32) {
    %c0_i32 = arith.constant 0 : i32
    %c0_i32_0 = arith.constant 0 : i32
    %c0_i32_1 = arith.constant 0 : i32
    return %arg0, %c0_i32, %c0_i32_0 : i32, i32, i32
  }
}

</mosaic_0001>

<llo_original>
// kernel: tpu_custom_call.1
$region0: #{tpu_custom_call.1}
  #allocation0 [shape = 'u32[]', space=smem, size = 0x4, offset = 0x4, fixed_abs, tag = 'smem constant byte address 0x4 - core index']
  #allocation1 [shape = 'u32[144,128]{1,0:T(1,128)}', space=vmem, size = 0x12000, scoped, tag = 'internal scratch']
  %s0 = inlined_call_operand.vmem [shape: f32[1,4,512], index: 0, kind: input, shape index: {}]
  %s1 = inlined_call_operand.vmem [shape: f32[9,512], index: 1, kind: input, shape index: {}]
  %s2 = inlined_call_operand.hbm [shape: f32[4,4,5], index: 2, kind: input, shape index: {}]
  %s3 = inlined_call_operand.vmem [shape: f32[36,12], index: 3, kind: input, shape index: {}]
  %s4 = inlined_call_operand.vmem [shape: f32[32,5], index: 4, kind: input, shape index: {}]
  %s5 = inlined_call_operand.hbm [shape: f32[1,32,512], index: 5, kind: output, shape index: {}]
  %s6 = sld [smem:[#allocation0]]
  $region34: #{tpu_custom_call.1} parent=0
    _
  %s8 = ssub.s32 1, %s6
  %s9 = scalar_select 0, %s8, %s6
  $region1: #{tpu_custom_call.1} parent=0
    #allocation2 [shape = 'u8[8192]{0}', space=vmem, size = 0x2000, scoped, tag = 'input window, operand 2, single buffered']
    #allocation3 [shape = 's32[1]{0}', space=sflag, size = 0x4, scoped, tag = 'scoped memory for tpu_custom_call.1']
    #allocation4 [shape = 's32[1]{0}', space=sflag, size = 0x4, scoped, tag = 'scoped memory for tpu_custom_call.1']
    #allocation5 [shape = 'u8[65536]{0}', space=vmem, size = 0x10000, scoped, tag = 'output window, operand 0, single buffered']
    %10 = vsyncpa [#allocation3], 0
    %11 = vsyncpa [#allocation4], 0
    // Predicated region
    $region2: #{tpu_custom_call.1} parent=1 // pred_check
      _
    $region3: #{tpu_custom_call.1} parent=1 // pred_check_branch
      %13 = sbr.rel (0) target = $region5
    $region4: #{tpu_custom_call.1} parent=1 // pred_region
      _
    $region5: #{tpu_custom_call.1} parent=1 // pred_fallthru
      _
    // Predicated region
    $region6: #{tpu_custom_call.1} parent=1 // pred_check
      _
    $region7: #{tpu_custom_call.1} parent=1 // pred_check_branch
      %15 = sbr.rel (0) target = $region9
    $region8: #{tpu_custom_call.1} parent=1 // pred_region
      _
    $region9: #{tpu_custom_call.1} parent=1 // pred_fallthru
      _
    // Predicated region
    $region10: #{tpu_custom_call.1} parent=1 // pred_check
      _
    $region11: #{tpu_custom_call.1} parent=1 // pred_check_branch
      %17 = sbr.rel (0) target = $region13
    $region12: #{tpu_custom_call.1} parent=1 // pred_region
      %s19 = ssub.s32 256, 256
      %20 = vsyncadd [#allocation3], %s19
      %s21 = sshll.u32 [#allocation2], 4
      %s22 = int_to_ptr.vmem [resolvable:$true] %s21
      %27 = dma.hbm_to_vmem [thread:$0]  %s2, 256, %s22, [#allocation3], 64, 64, 4
    $region13: #{tpu_custom_call.1} parent=1 // pred_fallthru
      _
    // Predicated region
    $region14: #{tpu_custom_call.1} parent=1 // pred_check
      _
    $region15: #{tpu_custom_call.1} parent=1 // pred_check_branch
      %29 = sbr.rel (0) target = $region17
    $region16: #{tpu_custom_call.1} parent=1 // pred_region
      _
    $region17: #{tpu_custom_call.1} parent=1 // pred_fallthru
      _
    // Predicated region
    $region18: #{tpu_custom_call.1} parent=1 // pred_check
      _
    $region19: #{tpu_custom_call.1} parent=1 // pred_check_branch
      %31 = sbr.rel (0) target = $region21
    $region20: #{tpu_custom_call.1} parent=1 // pred_region
      _
    $region21: #{tpu_custom_call.1} parent=1 // pred_fallthru
      _
    // Predicated region
    $region22: #{tpu_custom_call.1} parent=1 // pred_check
      _
    $region23: #{tpu_custom_call.1} parent=1 // pred_check_branch
      %33 = sbr.rel (0) target = $region25
    $region24: #{tpu_custom_call.1} parent=1 // pred_region
      %34 = dma.done [#allocation3], 256
    $region25: #{tpu_custom_call.1} parent=1 // pred_fallthru
      _
    %v35 = vld [vmem:[%s0] sm:$0xff]
    %v36 = vld [vmem:[%s0 + $0x8] sm:$0xff]
    %v37 = vld [vmem:[%s1] sm:$0xff]
    %v38 = vld [vmem:[%s1 + $0x8] sm:$0xff]
    %v39 = vld [vmem:[%s1 + $0x10] sm:$0xff]
    %v40 = vld [vmem:[%s1 + $0x18] sm:$0xff]
    %v41 = vld [vmem:[%s1 + $0x20] sm:$0x1]
    %v42 = vld [vmem:[%s1 + $0x28] sm:$0x1]
    %v43 = vld [vmem:[%s1 + $0x30] sm:$0x1]
    %v44 = vld [vmem:[%s1 + $0x38] sm:$0x1]
    %v45 = vld [vmem:[#allocation2] sm:$0xf]
    %v46 = vld [vmem:[#allocation2 + $0x4] sm:$0xf]
    %v47 = vld [vmem:[#allocation2 + $0x8] sm:$0xf]
    %v48 = vld [vmem:[#allocation2 + $0xc] sm:$0xf]
    %v49 = vld [vmem:[%s4] sm:$0xff]
    %v50 = vld [vmem:[%s4 + $0x8] sm:$0xff]
    %v51 = vld [vmem:[%s4 + $0x10] sm:$0xff]
    %v52 = vld [vmem:[%s4 + $0x18] sm:$0xff]
    %v53 = vlaneseq
    %v54 = vshrl.u32 %v53, 7
    %v55 = vsub.s32 0, %v54
    %v56 = vrot.slane %v37, %v55
    %v57 = vlaneseq
    %v58 = vshrl.u32 %v57, 7
    %v59 = vsub.s32 0, %v58
    %v60 = vrot.slane %v38, %v59
    %v61 = vlaneseq
    %v62 = vshrl.u32 %v61, 7
    %v63 = vsub.s32 0, %v62
    %v64 = vrot.slane %v39, %v63
    %v65 = vlaneseq
    %v66 = vshrl.u32 %v65, 7
    %v67 = vsub.s32 0, %v66
    %v68 = vrot.slane %v40, %v67
    %v69 = vlaneseq
    %v70 = vshrl.u32 %v69, 7
    %v71 = vsub.s32 1, %v70
    %v72 = vrot.slane %v37, %v71
    %v73 = vlaneseq
    %v74 = vshrl.u32 %v73, 7
    %v75 = vsub.s32 1, %v74
    %v76 = vrot.slane %v38, %v75
    %v77 = vlaneseq
    %v78 = vshrl.u32 %v77, 7
    %v79 = vsub.s32 1, %v78
    %v80 = vrot.slane %v39, %v79
    %v81 = vlaneseq
    %v82 = vshrl.u32 %v81, 7
    %v83 = vsub.s32 1, %v82
    %v84 = vrot.slane %v40, %v83
    %v85 = vlaneseq
    %v86 = vshrl.u32 %v85, 7
    %v87 = vsub.s32 2, %v86
    %v88 = vrot.slane %v37, %v87
    %v89 = vlaneseq
    %v90 = vshrl.u32 %v89, 7
    %v91 = vsub.s32 2, %v90
    %v92 = vrot.slane %v38, %v91
    %v93 = vlaneseq
    %v94 = vshrl.u32 %v93, 7
    %v95 = vsub.s32 2, %v94
    %v96 = vrot.slane %v39, %v95
    %v97 = vlaneseq
    %v98 = vshrl.u32 %v97, 7
    %v99 = vsub.s32 2, %v98
    %v100 = vrot.slane %v40, %v99
    %v101 = vlaneseq
    %v102 = vshrl.u32 %v101, 7
    %v103 = vsub.s32 3, %v102
    %v104 = vrot.slane %v37, %v103
    %v105 = vlaneseq
    %v106 = vshrl.u32 %v105, 7
    %v107 = vsub.s32 3, %v106
    %v108 = vrot.slane %v38, %v107
    %v109 = vlaneseq
    %v110 = vshrl.u32 %v109, 7
    %v111 = vsub.s32 3, %v110
    %v112 = vrot.slane %v39, %v111
    %v113 = vlaneseq
    %v114 = vshrl.u32 %v113, 7
    %v115 = vsub.s32 3, %v114
    %v116 = vrot.slane %v40, %v115
    %v117 = vlaneseq
    %v118 = vshrl.u32 %v117, 7
    %v119 = vsub.s32 5, %v118
    %v120 = vrot.slane %v37, %v119
    %v121 = vlaneseq
    %v122 = vshrl.u32 %v121, 7
    %v123 = vsub.s32 5, %v122
    %v124 = vrot.slane %v38, %v123
    %v125 = vlaneseq
    %v126 = vshrl.u32 %v125, 7
    %v127 = vsub.s32 5, %v126
    %v128 = vrot.slane %v39, %v127
    %v129 = vlaneseq
    %v130 = vshrl.u32 %v129, 7
    %v131 = vsub.s32 5, %v130
    %v132 = vrot.slane %v40, %v131
    %v133 = vlaneseq
    %v134 = vshrl.u32 %v133, 7
    %v135 = vsub.s32 6, %v134
    %v136 = vrot.slane %v37, %v135
    %v137 = vlaneseq
    %v138 = vshrl.u32 %v137, 7
    %v139 = vsub.s32 6, %v138
    %v140 = vrot.slane %v38, %v139
    %v141 = vlaneseq
    %v142 = vshrl.u32 %v141, 7
    %v143 = vsub.s32 6, %v142
    %v144 = vrot.slane %v39, %v143
    %v145 = vlaneseq
    %v146 = vshrl.u32 %v145, 7
    %v147 = vsub.s32 6, %v146
    %v148 = vrot.slane %v40, %v147
    %v149 = vlaneseq
    %v150 = vshrl.u32 %v149, 7
    %v151 = vsub.s32 7, %v150
    %v152 = vrot.slane %v37, %v151
    %v153 = vlaneseq
    %v154 = vshrl.u32 %v153, 7
    %v155 = vsub.s32 7, %v154
    %v156 = vrot.slane %v38, %v155
    %v157 = vlaneseq
    %v158 = vshrl.u32 %v157, 7
    %v159 = vsub.s32 7, %v158
    %v160 = vrot.slane %v39, %v159
    %v161 = vlaneseq
    %v162 = vshrl.u32 %v161, 7
    %v163 = vsub.s32 7, %v162
    %v164 = vrot.slane %v40, %v163
    %v165 = vlaneseq
    %v166 = vshrl.u32 %v165, 7
    %v167 = vsub.s32 0, %v166
    %v168 = vrot.slane %v41, %v167
    %v169 = vlaneseq
    %v170 = vshrl.u32 %v169, 7
    %v171 = vsub.s32 0, %v170
    %v172 = vrot.slane %v42, %v171
    %v173 = vlaneseq
    %v174 = vshrl.u32 %v173, 7
    %v175 = vsub.s32 0, %v174
    %v176 = vrot.slane %v43, %v175
    %v177 = vlaneseq
    %v178 = vshrl.u32 %v177, 7
    %v179 = vsub.s32 0, %v178
    %v180 = vrot.slane %v44, %v179
    %182 = vset.pattern.permute.xlu0 4
    %183 = vperm.xlu0 %182, %v45
    %v184 = vpop.permute.xlu0 %183
    %186 = vset.pattern.permute.xlu0 0
    %187 = vperm.xlu0 %186, %v45
    %v188 = vpop.permute.xlu0 %187
    %v192 = vlaneseq
    %v193 = vshrl.u32 %v192, 7
    %v194 = vsub.s32 0, %v193
    %v195 = vrot.slane %v35, %v194
    %v196 = vlaneseq
    %v197 = vshrl.u32 %v196, 7
    %v198 = vsub.s32 4, %v197
    %v199 = vrot.slane %v35, %v198
    %v200 = vlaneseq
    %v201 = vshrl.u32 %v200, 7
    %v202 = vsub.s32 0, %v201
    %v203 = vrot.slane %v36, %v202
    %v204 = vlaneseq
    %v205 = vshrl.u32 %v204, 7
    %v206 = vsub.s32 4, %v205
    %v207 = vrot.slane %v36, %v206
    %v212 = vlaneseq
    %v213 = vshrl.u32 %v212, 7
    %v214 = vsub.s32 0, %v213
    %v215 = vrot.slane %v195, %v214
    %v216 = vlaneseq
    %v217 = vshrl.u32 %v216, 7
    %v218 = vsub.s32 0, %v217
    %v219 = vrot.slane %v199, %v218
    %v220 = vlaneseq
    %v221 = vshrl.u32 %v220, 7
    %v222 = vsub.s32 0, %v221
    %v223 = vrot.slane %v203, %v222
    %v224 = vlaneseq
    %v225 = vshrl.u32 %v224, 7
    %v226 = vsub.s32 0, %v225
    %v227 = vrot.slane %v207, %v226
    %v228 = vmul.f32 %v188, %v215
    %v229 = vmul.f32 %v188, %v219
    %v230 = vmul.f32 %v188, %v223
    %v231 = vmul.f32 %v188, %v227
    %v232 = vadd.f32 %v184, %v228
    %v233 = vadd.f32 %v184, %v229
    %v234 = vadd.f32 %v184, %v230
    %v235 = vadd.f32 %v184, %v231
    %236 = vset.pattern.permute.xlu0 1
    %237 = vperm.xlu0 %236, %v45
    %v238 = vpop.permute.xlu0 %237
    %v240 = vlaneseq
    %v241 = vshrl.u32 %v240, 7
    %v242 = vsub.s32 1, %v241
    %v243 = vrot.slane %v35, %v242
    %v244 = vlaneseq
    %v245 = vshrl.u32 %v244, 7
    %v246 = vsub.s32 5, %v245
    %v247 = vrot.slane %v35, %v246
    %v248 = vlaneseq
    %v249 = vshrl.u32 %v248, 7
    %v250 = vsub.s32 1, %v249
    %v251 = vrot.slane %v36, %v250
    %v252 = vlaneseq
    %v253 = vshrl.u32 %v252, 7
    %v254 = vsub.s32 5, %v253
    %v255 = vrot.slane %v36, %v254
    %v260 = vlaneseq
    %v261 = vshrl.u32 %v260, 7
    %v262 = vsub.s32 1, %v261
    %v263 = vrot.slane %v243, %v262
    %v264 = vlaneseq
    %v265 = vshrl.u32 %v264, 7
    %v266 = vsub.s32 1, %v265
    %v267 = vrot.slane %v247, %v266
    %v268 = vlaneseq
    %v269 = vshrl.u32 %v268, 7
    %v270 = vsub.s32 1, %v269
    %v271 = vrot.slane %v251, %v270
    %v272 = vlaneseq
    %v273 = vshrl.u32 %v272, 7
    %v274 = vsub.s32 1, %v273
    %v275 = vrot.slane %v255, %v274
    %v276 = vmul.f32 %v238, %v263
    %v277 = vmul.f32 %v238, %v267
    %v278 = vmul.f32 %v238, %v271
    %v279 = vmul.f32 %v238, %v275
    %v280 = vadd.f32 %v232, %v276
    %v281 = vadd.f32 %v233, %v277
    %v282 = vadd.f32 %v234, %v278
    %v283 = vadd.f32 %v235, %v279
    %284 = vset.pattern.permute.xlu0 2
    %285 = vperm.xlu0 %284, %v45
    %v286 = vpop.permute.xlu0 %285
    %v288 = vlaneseq
    %v289 = vshrl.u32 %v288, 7
    %v290 = vsub.s32 2, %v289
    %v291 = vrot.slane %v35, %v290
    %v292 = vlaneseq
    %v293 = vshrl.u32 %v292, 7
    %v294 = vsub.s32 6, %v293
    %v295 = vrot.slane %v35, %v294
    %v296 = vlaneseq
    %v297 = vshrl.u32 %v296, 7
    %v298 = vsub.s32 2, %v297
    %v299 = vrot.slane %v36, %v298
    %v300 = vlaneseq
    %v301 = vshrl.u32 %v300, 7
    %v302 = vsub.s32 6, %v301
    %v303 = vrot.slane %v36, %v302
    %v308 = vlaneseq
    %v309 = vshrl.u32 %v308, 7
    %v310 = vsub.s32 2, %v309
    %v311 = vrot.slane %v291, %v310
    %v312 = vlaneseq
    %v313 = vshrl.u32 %v312, 7
    %v314 = vsub.s32 2, %v313
    %v315 = vrot.slane %v295, %v314
    %v316 = vlaneseq
    %v317 = vshrl.u32 %v316, 7
    %v318 = vsub.s32 2, %v317
    %v319 = vrot.slane %v299, %v318
    %v320 = vlaneseq
    %v321 = vshrl.u32 %v320, 7
    %v322 = vsub.s32 2, %v321
    %v323 = vrot.slane %v303, %v322
    %v324 = vmul.f32 %v286, %v311
    %v325 = vmul.f32 %v286, %v315
    %v326 = vmul.f32 %v286, %v319
    %v327 = vmul.f32 %v286, %v323
    %v328 = vadd.f32 %v280, %v324
    %v329 = vadd.f32 %v281, %v325
    %v330 = vadd.f32 %v282, %v326
    %v331 = vadd.f32 %v283, %v327
    %332 = vset.pattern.permute.xlu0 3
    %333 = vperm.xlu0 %332, %v45
    %v334 = vpop.permute.xlu0 %333
    %v336 = vlaneseq
    %v337 = vshrl.u32 %v336, 7
    %v338 = vsub.s32 3, %v337
    %v339 = vrot.slane %v35, %v338
    %v340 = vlaneseq
    %v341 = vshrl.u32 %v340, 7
    %v342 = vsub.s32 7, %v341
    %v343 = vrot.slane %v35, %v342
    %v344 = vlaneseq
    %v345 = vshrl.u32 %v344, 7
    %v346 = vsub.s32 3, %v345
    %v347 = vrot.slane %v36, %v346
    %v348 = vlaneseq
    %v349 = vshrl.u32 %v348, 7
    %v350 = vsub.s32 7, %v349
    %v351 = vrot.slane %v36, %v350
    %v356 = vlaneseq
    %v357 = vshrl.u32 %v356, 7
    %v358 = vsub.s32 3, %v357
    %v359 = vrot.slane %v339, %v358
    %v360 = vlaneseq
    %v361 = vshrl.u32 %v360, 7
    %v362 = vsub.s32 3, %v361
    %v363 = vrot.slane %v343, %v362
    %v364 = vlaneseq
    %v365 = vshrl.u32 %v364, 7
    %v366 = vsub.s32 3, %v365
    %v367 = vrot.slane %v347, %v366
    %v368 = vlaneseq
    %v369 = vshrl.u32 %v368, 7
    %v370 = vsub.s32 3, %v369
    %v371 = vrot.slane %v351, %v370
    %v372 = vmul.f32 %v334, %v359
    %v373 = vmul.f32 %v334, %v363
    %v374 = vmul.f32 %v334, %v367
    %v375 = vmul.f32 %v334, %v371
    %v376 = vadd.f32 %v328, %v372
    %v377 = vadd.f32 %v329, %v373
    %v378 = vadd.f32 %v330, %v374
    %v379 = vadd.f32 %v331, %v375
    %v380 = vmax.f32 %v376, 0.0
    %v381 = vmax.f32 %v377, 0.0
    %v382 = vmax.f32 %v378, 0.0
    %v383 = vmax.f32 %v379, 0.0
    %385 = vset.pattern.permute.xlu0 4
    %386 = vperm.xlu0 %385, %v46
    %v387 = vpop.permute.xlu0 %386
    %389 = vset.pattern.permute.xlu0 0
    %390 = vperm.xlu0 %389, %v46
    %v391 = vpop.permute.xlu0 %390
    %v393 = vlaneseq
    %v394 = vshrl.u32 %v393, 7
    %v395 = vsub.s32 0, %v394
    %v396 = vrot.slane %v380, %v395
    %v397 = vlaneseq
    %v398 = vshrl.u32 %v397, 7
    %v399 = vsub.s32 0, %v398
    %v400 = vrot.slane %v381, %v399
    %v401 = vlaneseq
    %v402 = vshrl.u32 %v401, 7
    %v403 = vsub.s32 0, %v402
    %v404 = vrot.slane %v382, %v403
    %v405 = vlaneseq
    %v406 = vshrl.u32 %v405, 7
    %v407 = vsub.s32 0, %v406
    %v408 = vrot.slane %v383, %v407
    %v409 = vmul.f32 %v391, %v396
    %v410 = vmul.f32 %v391, %v400
    %v411 = vmul.f32 %v391, %v404
    %v412 = vmul.f32 %v391, %v408
    %v413 = vadd.f32 %v387, %v409
    %v414 = vadd.f32 %v387, %v410
    %v415 = vadd.f32 %v387, %v411
    %v416 = vadd.f32 %v387, %v412
    %417 = vset.pattern.permute.xlu0 1
    %418 = vperm.xlu0 %417, %v46
    %v419 = vpop.permute.xlu0 %418
    %v421 = vlaneseq
    %v422 = vshrl.u32 %v421, 7
    %v423 = vsub.s32 1, %v422
    %v424 = vrot.slane %v380, %v423
    %v425 = vlaneseq
    %v426 = vshrl.u32 %v425, 7
    %v427 = vsub.s32 1, %v426
    %v428 = vrot.slane %v381, %v427
    %v429 = vlaneseq
    %v430 = vshrl.u32 %v429, 7
    %v431 = vsub.s32 1, %v430
    %v432 = vrot.slane %v382, %v431
    %v433 = vlaneseq
    %v434 = vshrl.u32 %v433, 7
    %v435 = vsub.s32 1, %v434
    %v436 = vrot.slane %v383, %v435
    %v437 = vmul.f32 %v419, %v424
    %v438 = vmul.f32 %v419, %v428
    %v439 = vmul.f32 %v419, %v432
    %v440 = vmul.f32 %v419, %v436
    %v441 = vadd.f32 %v413, %v437
    %v442 = vadd.f32 %v414, %v438
    %v443 = vadd.f32 %v415, %v439
    %v444 = vadd.f32 %v416, %v440
    %445 = vset.pattern.permute.xlu0 2
    %446 = vperm.xlu0 %445, %v46
    %v447 = vpop.permute.xlu0 %446
    %v449 = vlaneseq
    %v450 = vshrl.u32 %v449, 7
    %v451 = vsub.s32 2, %v450
    %v452 = vrot.slane %v380, %v451
    %v453 = vlaneseq
    %v454 = vshrl.u32 %v453, 7
    %v455 = vsub.s32 2, %v454
    %v456 = vrot.slane %v381, %v455
    %v457 = vlaneseq
    %v458 = vshrl.u32 %v457, 7
    %v459 = vsub.s32 2, %v458
    %v460 = vrot.slane %v382, %v459
    %v461 = vlaneseq
    %v462 = vshrl.u32 %v461, 7
    %v463 = vsub.s32 2, %v462
    %v464 = vrot.slane %v383, %v463
    %v465 = vmul.f32 %v447, %v452
    %v466 = vmul.f32 %v447, %v456
    %v467 = vmul.f32 %v447, %v460
    %v468 = vmul.f32 %v447, %v464
    %v469 = vadd.f32 %v441, %v465
    %v470 = vadd.f32 %v442, %v466
    %v471 = vadd.f32 %v443, %v467
    %v472 = vadd.f32 %v444, %v468
    %473 = vset.pattern.permute.xlu0 3
    %474 = vperm.xlu0 %473, %v46
    %v475 = vpop.permute.xlu0 %474
    %v477 = vlaneseq
    %v478 = vshrl.u32 %v477, 7
    %v479 = vsub.s32 3, %v478
    %v480 = vrot.slane %v380, %v479
    %v481 = vlaneseq
    %v482 = vshrl.u32 %v481, 7
    %v483 = vsub.s32 3, %v482
    %v484 = vrot.slane %v381, %v483
    %v485 = vlaneseq
    %v486 = vshrl.u32 %v485, 7
    %v487 = vsub.s32 3, %v486
    %v488 = vrot.slane %v382, %v487
    %v489 = vlaneseq
    %v490 = vshrl.u32 %v489, 7
    %v491 = vsub.s32 3, %v490
    %v492 = vrot.slane %v383, %v491
    %v493 = vmul.f32 %v475, %v480
    %v494 = vmul.f32 %v475, %v484
    %v495 = vmul.f32 %v475, %v488
    %v496 = vmul.f32 %v475, %v492
    %v497 = vadd.f32 %v469, %v493
    %v498 = vadd.f32 %v470, %v494
    %v499 = vadd.f32 %v471, %v495
    %v500 = vadd.f32 %v472, %v496
    %v501 = vmax.f32 %v497, 0.0
    %v502 = vmax.f32 %v498, 0.0
    %v503 = vmax.f32 %v499, 0.0
    %v504 = vmax.f32 %v500, 0.0
    %506 = vset.pattern.permute.xlu0 4
    %507 = vperm.xlu0 %506, %v47
    %v508 = vpop.permute.xlu0 %507
    %510 = vset.pattern.permute.xlu0 0
    %511 = vperm.xlu0 %510, %v47
    %v512 = vpop.permute.xlu0 %511
    %v514 = vlaneseq
    %v515 = vshrl.u32 %v514, 7
    %v516 = vsub.s32 0, %v515
    %v517 = vrot.slane %v501, %v516
    %v518 = vlaneseq
    %v519 = vshrl.u32 %v518, 7
    %v520 = vsub.s32 0, %v519
    %v521 = vrot.slane %v502, %v520
    %v522 = vlaneseq
    %v523 = vshrl.u32 %v522, 7
    %v524 = vsub.s32 0, %v523
    %v525 = vrot.slane %v503, %v524
    %v526 = vlaneseq
    %v527 = vshrl.u32 %v526, 7
    %v528 = vsub.s32 0, %v527
    %v529 = vrot.slane %v504, %v528
    %v530 = vmul.f32 %v512, %v517
    %v531 = vmul.f32 %v512, %v521
    %v532 = vmul.f32 %v512, %v525
    %v533 = vmul.f32 %v512, %v529
    %v534 = vadd.f32 %v508, %v530
    %v535 = vadd.f32 %v508, %v531
    %v536 = vadd.f32 %v508, %v532
    %v537 = vadd.f32 %v508, %v533
    %538 = vset.pattern.permute.xlu0 1
    %539 = vperm.xlu0 %538, %v47
    %v540 = vpop.permute.xlu0 %539
    %v542 = vlaneseq
    %v543 = vshrl.u32 %v542, 7
    %v544 = vsub.s32 1, %v543
    %v545 = vrot.slane %v501, %v544
    %v546 = vlaneseq
    %v547 = vshrl.u32 %v546, 7
    %v548 = vsub.s32 1, %v547
    %v549 = vrot.slane %v502, %v548
    %v550 = vlaneseq
    %v551 = vshrl.u32 %v550, 7
    %v552 = vsub.s32 1, %v551
    %v553 = vrot.slane %v503, %v552
    %v554 = vlaneseq
    %v555 = vshrl.u32 %v554, 7
    %v556 = vsub.s32 1, %v555
    %v557 = vrot.slane %v504, %v556
    %v558 = vmul.f32 %v540, %v545
    %v559 = vmul.f32 %v540, %v549
    %v560 = vmul.f32 %v540, %v553
    %v561 = vmul.f32 %v540, %v557
    %v562 = vadd.f32 %v534, %v558
    %v563 = vadd.f32 %v535, %v559
    %v564 = vadd.f32 %v536, %v560
    %v565 = vadd.f32 %v537, %v561
    %566 = vset.pattern.permute.xlu0 2
    %567 = vperm.xlu0 %566, %v47
    %v568 = vpop.permute.xlu0 %567
    %v570 = vlaneseq
    %v571 = vshrl.u32 %v570, 7
    %v572 = vsub.s32 2, %v571
    %v573 = vrot.slane %v501, %v572
    %v574 = vlaneseq
    %v575 = vshrl.u32 %v574, 7
    %v576 = vsub.s32 2, %v575
    %v577 = vrot.slane %v502, %v576
    %v578 = vlaneseq
    %v579 = vshrl.u32 %v578, 7
    %v580 = vsub.s32 2, %v579
    %v581 = vrot.slane %v503, %v580
    %v582 = vlaneseq
    %v583 = vshrl.u32 %v582, 7
    %v584 = vsub.s32 2, %v583
    %v585 = vrot.slane %v504, %v584
    %v586 = vmul.f32 %v568, %v573
    %v587 = vmul.f32 %v568, %v577
    %v588 = vmul.f32 %v568, %v581
    %v589 = vmul.f32 %v568, %v585
    %v590 = vadd.f32 %v562, %v586
    %v591 = vadd.f32 %v563, %v587
    %v592 = vadd.f32 %v564, %v588
    %v593 = vadd.f32 %v565, %v589
    %594 = vset.pattern.permute.xlu0 3
    %595 = vperm.xlu0 %594, %v47
    %v596 = vpop.permute.xlu0 %595
    %v598 = vlaneseq
    %v599 = vshrl.u32 %v598, 7
    %v600 = vsub.s32 3, %v599
    %v601 = vrot.slane %v501, %v600
    %v602 = vlaneseq
    %v603 = vshrl.u32 %v602, 7
    %v604 = vsub.s32 3, %v603
    %v605 = vrot.slane %v502, %v604
    %v606 = vlaneseq
    %v607 = vshrl.u32 %v606, 7
    %v608 = vsub.s32 3, %v607
    %v609 = vrot.slane %v503, %v608
    %v610 = vlaneseq
    %v611 = vshrl.u32 %v610, 7
    %v612 = vsub.s32 3, %v611
    %v613 = vrot.slane %v504, %v612
    %v614 = vmul.f32 %v596, %v601
    %v615 = vmul.f32 %v596, %v605
    %v616 = vmul.f32 %v596, %v609
    %v617 = vmul.f32 %v596, %v613
    %v618 = vadd.f32 %v590, %v614
    %v619 = vadd.f32 %v591, %v615
    %v620 = vadd.f32 %v592, %v616
    %v621 = vadd.f32 %v593, %v617
    %v622 = vmax.f32 %v618, 0.0
    %v623 = vmax.f32 %v619, 0.0
    %v624 = vmax.f32 %v620, 0.0
    %v625 = vmax.f32 %v621, 0.0
    %v630 = vrot.slane %v501, 4
    %v631 = vrot.slane %v502, 4
    %v632 = vrot.slane %v503, 4
    %v633 = vrot.slane %v504, 4
    %vm638 = vcmask 1043456
    %v639 = vsel %vm638, %v380, %v630
    %v640 = vsel %vm638, %v381, %v631
    %v641 = vsel %vm638, %v382, %v632
    %v642 = vsel %vm638, %v383, %v633
    %v643 = vld [vmem:[%s3] sm:$0xff]
    %v644 = vld [vmem:[%s3 + $0x8] sm:$0xff]
    %v645 = vld [vmem:[%s3 + $0x10] sm:$0xff]
    %v646 = vld [vmem:[%s3 + $0x18] sm:$0xff]
    %v647 = vld [vmem:[%s3 + $0x20] sm:$0xf]
    %vm648 = vcmask 97280
    %v650 = vsel %vm648, %v643, 0
    %v653 = vsel %vm648, %v644, 0
    %v656 = vsel %vm648, %v645, 0
    %v659 = vsel %vm648, %v646, 0
    %v662 = vsel %vm648, %v647, 0
    %v665 = vsel %vm638, %v622, 0
    %v668 = vsel %vm638, %v623, 0
    %v671 = vsel %vm638, %v624, 0
    %v674 = vsel %vm638, %v625, 0
    %676 = vmatprep.subr.mxu0 %v640
    %677 = vmatpush1.msra.mxu0 %v639
    %678 = vmatprep.subr.mxu0 %v668
    %679 = vmatpush1.msra.mxu0 %v665
    %680 = vmatprep.subr.mxu0 0.0
    %681 = vmatpush1.msra.mxu0 0.0
    %682 = vmatprep.subr.mxu0 0.0
    %683 = vmatpush1.msra.mxu0 0.0
    %684 = vmatprep.subr.mxu0 0.0
    %685 = vmatpush1.msra.mxu0 0.0
    %686 = vmatprep.subr.mxu0 0.0
    %687 = vmatpush1.msra.mxu0 0.0
    %688 = vmatprep.subr.mxu0 0.0
    %689 = vmatpush1.msra.mxu0 0.0
    %690 = vmatprep.subr.mxu0 0.0
    %691 = vmatpush1.msra.mxu0 0.0
    %692 = vmatprep.subr.mxu0 0.0
    %693 = vmatpush1.msra.mxu0 0.0
    %694 = vmatprep.subr.mxu0 0.0
    %695 = vmatpush1.msra.mxu0 0.0
    %696 = vmatprep.subr.mxu0 0.0
    %697 = vmatpush1.msra.mxu0 0.0
    %698 = vmatprep.subr.mxu0 0.0
    %699 = vmatpush1.msra.mxu0 0.0
    %700 = vmatprep.subr.mxu0 0.0
    %701 = vmatpush1.msra.mxu0 0.0
    %702 = vmatprep.subr.mxu0 0.0
    %703 = vmatpush1.msra.mxu0 0.0
    %704 = vmatprep.subr.mxu0 0.0
    %705 = vmatpush1.msra.mxu0 0.0
    %706 = vmatprep.subr.mxu0 0.0
    %707 = vmatpush1.msra.mxu0 0.0
    %708 = vmatprep.subr.mxu0 0.0
    %709 = vmatpush1.msra.mxu0 0.0
    %710 = vmatprep.subr.mxu0 0.0
    %711 = vmatpush1.msra.mxu0 0.0
    %712 = vmatprep.subr.mxu0 0.0
    %713 = vmatpush1.msra.mxu0 0.0
    %714 = vmatprep.subr.mxu0 0.0
    %715 = vmatpush1.msra.mxu0 0.0
    %716 = vmatprep.subr.mxu0 0.0
    %717 = vmatpush1.msra.mxu0 0.0
    %718 = vmatprep.subr.mxu0 0.0
    %719 = vmatpush1.msra.mxu0 0.0
    %720 = vmatprep.subr.mxu0 0.0
    %721 = vmatpush1.msra.mxu0 0.0
    %722 = vmatprep.subr.mxu0 0.0
    %723 = vmatpush1.msra.mxu0 0.0
    %724 = vmatprep.subr.mxu0 0.0
    %725 = vmatpush1.msra.mxu0 0.0
    %726 = vmatprep.subr.mxu0 0.0
    %727 = vmatpush1.msra.mxu0 0.0
    %728 = vmatprep.subr.mxu0 0.0
    %729 = vmatpush1.msra.mxu0 0.0
    %730 = vmatprep.subr.mxu0 0.0
    %731 = vmatpush1.msra.mxu0 0.0
    %732 = vmatprep.subr.mxu0 0.0
    %733 = vmatpush1.msra.mxu0 0.0
    %734 = vmatprep.subr.mxu0 0.0
    %735 = vmatpush1.msra.mxu0 0.0
    %736 = vmatprep.subr.mxu0 0.0
    %737 = vmatpush1.msra.mxu0 0.0
    %738 = vmatprep.subr.mxu0 0.0
    %739 = vmatpush1.msra.mxu0 0.0
    %740 = vmatprep.mubr.f32.mxu0 0.0
    %741 = vmatmul.mubr.f32.gmra.mrb[0].mxu0 %v650
    %v742 = vpop.f32.mrb[0].mxu0
    %v743 = vadd.f32 0.0, %v742
    %v744 = vpop.f32.mrb[0].mxu0
    %v745 = vadd.f32 0.0, %v744
    %746 = vmatprep.mubr.f32.mxu0 0.0
    %747 = vmatmul.mubr.f32.gmra.mrb[0].mxu0 %v653
    %v748 = vpop.f32.mrb[0].mxu0
    %v749 = vadd.f32 0.0, %v748
    %v750 = vpop.f32.mrb[0].mxu0
    %v751 = vadd.f32 0.0, %v750
    %752 = vmatprep.mubr.f32.mxu0 0.0
    %753 = vmatmul.mubr.f32.gmra.mrb[0].mxu0 %v656
    %v754 = vpop.f32.mrb[0].mxu0
    %v755 = vadd.f32 0.0, %v754
    %v756 = vpop.f32.mrb[0].mxu0
    %v757 = vadd.f32 0.0, %v756
    %758 = vmatprep.mubr.f32.mxu0 0.0
    %759 = vmatmul.mubr.f32.gmra.mrb[0].mxu0 %v659
    %v760 = vpop.f32.mrb[0].mxu0
    %v761 = vadd.f32 0.0, %v760
    %v762 = vpop.f32.mrb[0].mxu0
    %v763 = vadd.f32 0.0, %v762
    %764 = vmatprep.mubr.f32.mxu0 0.0
    %765 = vmatmul.mubr.f32.gmra.mrb[0].mxu0 %v662
    %v766 = vpop.f32.mrb[0].mxu0
    %v767 = vadd.f32 0.0, %v766
    %v768 = vpop.f32.mrb[0].mxu0
    %v769 = vadd.f32 0.0, %v768
    %770 = vdwg.mxu0
    %771 = vmatprep.subr.mxu0 %v642
    %772 = vmatpush1.msra.mxu0 %v641
    %773 = vmatprep.subr.mxu0 %v674
    %774 = vmatpush1.msra.mxu0 %v671
    %775 = vmatprep.subr.mxu0 0.0
    %776 = vmatpush1.msra.mxu0 0.0
    %777 = vmatprep.subr.mxu0 0.0
    %778 = vmatpush1.msra.mxu0 0.0
    %779 = vmatprep.subr.mxu0 0.0
    %780 = vmatpush1.msra.mxu0 0.0
    %781 = vmatprep.subr.mxu0 0.0
    %782 = vmatpush1.msra.mxu0 0.0
    %783 = vmatprep.subr.mxu0 0.0
    %784 = vmatpush1.msra.mxu0 0.0
    %785 = vmatprep.subr.mxu0 0.0
    %786 = vmatpush1.msra.mxu0 0.0
    %787 = vmatprep.subr.mxu0 0.0
    %788 = vmatpush1.msra.mxu0 0.0
    %789 = vmatprep.subr.mxu0 0.0
    %790 = vmatpush1.msra.mxu0 0.0
    %791 = vmatprep.subr.mxu0 0.0
    %792 = vmatpush1.msra.mxu0 0.0
    %793 = vmatprep.subr.mxu0 0.0
    %794 = vmatpush1.msra.mxu0 0.0
    %795 = vmatprep.subr.mxu0 0.0
    %796 = vmatpush1.msra.mxu0 0.0
    %797 = vmatprep.subr.mxu0 0.0
    %798 = vmatpush1.msra.mxu0 0.0
    %799 = vmatprep.subr.mxu0 0.0
    %800 = vmatpush1.msra.mxu0 0.0
    %801 = vmatprep.subr.mxu0 0.0
    %802 = vmatpush1.msra.mxu0 0.0
    %803 = vmatprep.subr.mxu0 0.0
    %804 = vmatpush1.msra.mxu0 0.0
    %805 = vmatprep.subr.mxu0 0.0
    %806 = vmatpush1.msra.mxu0 0.0
    %807 = vmatprep.subr.mxu0 0.0
    %808 = vmatpush1.msra.mxu0 0.0
    %809 = vmatprep.subr.mxu0 0.0
    %810 = vmatpush1.msra.mxu0 0.0
    %811 = vmatprep.subr.mxu0 0.0
    %812 = vmatpush1.msra.mxu0 0.0
    %813 = vmatprep.subr.mxu0 0.0
    %814 = vmatpush1.msra.mxu0 0.0
    %815 = vmatprep.subr.mxu0 0.0
    %816 = vmatpush1.msra.mxu0 0.0
    %817 = vmatprep.subr.mxu0 0.0
    %818 = vmatpush1.msra.mxu0 0.0
    %819 = vmatprep.subr.mxu0 0.0
    %820 = vmatpush1.msra.mxu0 0.0
    %821 = vmatprep.subr.mxu0 0.0
    %822 = vmatpush1.msra.mxu0 0.0
    %823 = vmatprep.subr.mxu0 0.0
    %824 = vmatpush1.msra.mxu0 0.0
    %825 = vmatprep.subr.mxu0 0.0
    %826 = vmatpush1.msra.mxu0 0.0
    %827 = vmatprep.subr.mxu0 0.0
    %828 = vmatpush1.msra.mxu0 0.0
    %829 = vmatprep.subr.mxu0 0.0
    %830 = vmatpush1.msra.mxu0 0.0
    %831 = vmatprep.subr.mxu0 0.0
    %832 = vmatpush1.msra.mxu0 0.0
    %833 = vmatprep.subr.mxu0 0.0
    %834 = vmatpush1.msra.mxu0 0.0
    %835 = vmatprep.mubr.f32.mxu0 0.0
    %836 = vmatmul.mubr.f32.gmra.mrb[0].mxu0 %v650
    %v837 = vpop.f32.mrb[0].mxu0
    %v838 = vadd.f32 0.0, %v837
    %v839 = vpop.f32.mrb[0].mxu0
    %v840 = vadd.f32 0.0, %v839
    %841 = vmatprep.mubr.f32.mxu0 0.0
    %842 = vmatmul.mubr.f32.gmra.mrb[0].mxu0 %v653
    %v843 = vpop.f32.mrb[0].mxu0
    %v844 = vadd.f32 0.0, %v843
    %v845 = vpop.f32.mrb[0].mxu0
    %v846 = vadd.f32 0.0, %v845
    %847 = vmatprep.mubr.f32.mxu0 0.0
    %848 = vmatmul.mubr.f32.gmra.mrb[0].mxu0 %v656
    %v849 = vpop.f32.mrb[0].mxu0
    %v850 = vadd.f32 0.0, %v849
    %v851 = vpop.f32.mrb[0].mxu0
    %v852 = vadd.f32 0.0, %v851
    %853 = vmatprep.mubr.f32.mxu0 0.0
    %854 = vmatmul.mubr.f32.gmra.mrb[0].mxu0 %v659
    %v855 = vpop.f32.mrb[0].mxu0
    %v856 = vadd.f32 0.0, %v855
    %v857 = vpop.f32.mrb[0].mxu0
    %v858 = vadd.f32 0.0, %v857
    %859 = vmatprep.mubr.f32.mxu0 0.0
    %860 = vmatmul.mubr.f32.gmra.mrb[0].mxu0 %v662
    %v861 = vpop.f32.mrb[0].mxu0
    %v862 = vadd.f32 0.0, %v861
    %v863 = vpop.f32.mrb[0].mxu0
    %v864 = vadd.f32 0.0, %v863
    %865 = vdwg.mxu0
    %867 = vset.pattern.permute.xlu0 4
    %868 = vperm.xlu0 %867, %v48
    %v869 = vpop.permute.xlu0 %868
    %871 = vrot.lane.b32.xlu0 %v743, 17
    %v872 = vpop.permute.xlu0 %871
    %873 = vrot.lane.b32.xlu0 %v745, 17
    %v874 = vpop.permute.xlu0 %873
    %875 = vrot.lane.b32.xlu0 %v838, 17
    %v876 = vpop.permute.xlu0 %875
    %877 = vrot.lane.b32.xlu0 %v840, 17
    %v878 = vpop.permute.xlu0 %877
    %v879 = vlaneseq
    %v880 = vand.u32 %v879, 127
    %vm881 = vcmp.lt.s32.totalorder %v880, 17
    %v882 = vsel %vm881, %v876, %v878
    %v883 = vsel %vm881, %v874, %v876
    %v884 = vsel %vm881, %v872, %v874
    %v885 = vsel %vm881, %v878, %v872
    %v886 = vmul.f32 %v885, %v56
    %v887 = vmul.f32 %v884, %v60
    %v888 = vmul.f32 %v883, %v64
    %v889 = vmul.f32 %v882, %v68
    %v890 = vadd.f32 %v869, %v886
    %v891 = vadd.f32 %v869, %v887
    %v892 = vadd.f32 %v869, %v888
    %v893 = vadd.f32 %v869, %v889
    %v898 = vrot.slane %v743, 4
    %v899 = vrot.slane %v745, 4
    %v900 = vrot.slane %v838, 4
    %v901 = vrot.slane %v840, 4
    %906 = vrot.lane.b32.xlu0 %v898, 16
    %v907 = vpop.permute.xlu0 %906
    %908 = vrot.lane.b32.xlu0 %v899, 16
    %v909 = vpop.permute.xlu0 %908
    %910 = vrot.lane.b32.xlu0 %v900, 16
    %v911 = vpop.permute.xlu0 %910
    %912 = vrot.lane.b32.xlu0 %v901, 16
    %v913 = vpop.permute.xlu0 %912
    %vm914 = vcmp.lt.s32.totalorder %v880, 16
    %v915 = vsel %vm914, %v911, %v913
    %v916 = vsel %vm914, %v909, %v911
    %v917 = vsel %vm914, %v907, %v909
    %v918 = vsel %vm914, %v913, %v907
    %v919 = vmul.f32 %v918, %v72
    %v920 = vmul.f32 %v917, %v76
    %v921 = vmul.f32 %v916, %v80
    %v922 = vmul.f32 %v915, %v84
    %v923 = vadd.f32 %v890, %v919
    %v924 = vadd.f32 %v891, %v920
    %v925 = vadd.f32 %v892, %v921
    %v926 = vadd.f32 %v893, %v922
    %927 = vrot.lane.b32.xlu0 %v749, 15
    %v928 = vpop.permute.xlu0 %927
    %929 = vrot.lane.b32.xlu0 %v751, 15
    %v930 = vpop.permute.xlu0 %929
    %931 = vrot.lane.b32.xlu0 %v844, 15
    %v932 = vpop.permute.xlu0 %931
    %933 = vrot.lane.b32.xlu0 %v846, 15
    %v934 = vpop.permute.xlu0 %933
    %vm935 = vcmp.lt.s32.totalorder %v880, 15
    %v936 = vsel %vm935, %v932, %v934
    %v937 = vsel %vm935, %v930, %v932
    %v938 = vsel %vm935, %v928, %v930
    %v939 = vsel %vm935, %v934, %v928
    %v940 = vmul.f32 %v939, %v88
    %v941 = vmul.f32 %v938, %v92
    %v942 = vmul.f32 %v937, %v96
    %v943 = vmul.f32 %v936, %v100
    %v944 = vadd.f32 %v923, %v940
    %v945 = vadd.f32 %v924, %v941
    %v946 = vadd.f32 %v925, %v942
    %v947 = vadd.f32 %v926, %v943
    %v952 = vrot.slane %v749, 4
    %v953 = vrot.slane %v751, 4
    %v954 = vrot.slane %v844, 4
    %v955 = vrot.slane %v846, 4
    %960 = vrot.lane.b32.xlu0 %v952, 1
    %v961 = vpop.permute.xlu0 %960
    %962 = vrot.lane.b32.xlu0 %v953, 1
    %v963 = vpop.permute.xlu0 %962
    %964 = vrot.lane.b32.xlu0 %v954, 1
    %v965 = vpop.permute.xlu0 %964
    %966 = vrot.lane.b32.xlu0 %v955, 1
    %v967 = vpop.permute.xlu0 %966
    %vm968 = vcmp.lt.s32.totalorder %v880, 1
    %v969 = vsel %vm968, %v965, %v967
    %v970 = vsel %vm968, %v963, %v965
    %v971 = vsel %vm968, %v961, %v963
    %v972 = vsel %vm968, %v967, %v961
    %v973 = vmul.f32 %v972, %v104
    %v974 = vmul.f32 %v971, %v108
    %v975 = vmul.f32 %v970, %v112
    %v976 = vmul.f32 %v969, %v116
    %v977 = vadd.f32 %v944, %v973
    %v978 = vadd.f32 %v945, %v974
    %v979 = vadd.f32 %v946, %v975
    %v980 = vadd.f32 %v947, %v976
    %v981 = vadd.f32 %v977, %v755
    %v982 = vadd.f32 %v978, %v757
    %v983 = vadd.f32 %v979, %v850
    %v984 = vadd.f32 %v980, %v852
    %v989 = vrot.slane %v755, 4
    %v990 = vrot.slane %v757, 4
    %v991 = vrot.slane %v850, 4
    %v992 = vrot.slane %v852, 4
    %997 = vrot.lane.b32.xlu0 %v989, 127
    %v998 = vpop.permute.xlu0 %997
    %999 = vrot.lane.b32.xlu0 %v990, 127
    %v1000 = vpop.permute.xlu0 %999
    %1001 = vrot.lane.b32.xlu0 %v991, 127
    %v1002 = vpop.permute.xlu0 %1001
    %1003 = vrot.lane.b32.xlu0 %v992, 127
    %v1004 = vpop.permute.xlu0 %1003
    %vm1005 = vcmp.lt.s32.totalorder %v880, 127
    %v1006 = vsel %vm1005, %v1002, %v1004
    %v1007 = vsel %vm1005, %v1000, %v1002
    %v1008 = vsel %vm1005, %v998, %v1000
    %v1009 = vsel %vm1005, %v1004, %v998
    %v1010 = vmul.f32 %v1008, %v120
    %v1011 = vmul.f32 %v1007, %v124
    %v1012 = vmul.f32 %v1006, %v128
    %v1013 = vmul.f32 %v1009, %v132
    %v1014 = vadd.f32 %v981, %v1010
    %v1015 = vadd.f32 %v982, %v1011
    %v1016 = vadd.f32 %v983, %v1012
    %v1017 = vadd.f32 %v984, %v1013
    %1018 = vrot.lane.b32.xlu0 %v761, 113
    %v1019 = vpop.permute.xlu0 %1018
    %1020 = vrot.lane.b32.xlu0 %v763, 113
    %v1021 = vpop.permute.xlu0 %1020
    %1022 = vrot.lane.b32.xlu0 %v856, 113
    %v1023 = vpop.permute.xlu0 %1022
    %1024 = vrot.lane.b32.xlu0 %v858, 113
    %v1025 = vpop.permute.xlu0 %1024
    %vm1026 = vcmp.lt.s32.totalorder %v880, 113
    %v1027 = vsel %vm1026, %v1023, %v1025
    %v1028 = vsel %vm1026, %v1021, %v1023
    %v1029 = vsel %vm1026, %v1019, %v1021
    %v1030 = vsel %vm1026, %v1025, %v1019
    %v1031 = vmul.f32 %v1029, %v136
    %v1032 = vmul.f32 %v1028, %v140
    %v1033 = vmul.f32 %v1027, %v144
    %v1034 = vmul.f32 %v1030, %v148
    %v1035 = vadd.f32 %v1014, %v1031
    %v1036 = vadd.f32 %v1015, %v1032
    %v1037 = vadd.f32 %v1016, %v1033
    %v1038 = vadd.f32 %v1017, %v1034
    %v1043 = vrot.slane %v761, 4
    %v1044 = vrot.slane %v763, 4
    %v1045 = vrot.slane %v856, 4
    %v1046 = vrot.slane %v858, 4
    %1051 = vrot.lane.b32.xlu0 %v1043, 112
    %v1052 = vpop.permute.xlu0 %1051
    %1053 = vrot.lane.b32.xlu0 %v1044, 112
    %v1054 = vpop.permute.xlu0 %1053
    %1055 = vrot.lane.b32.xlu0 %v1045, 112
    %v1056 = vpop.permute.xlu0 %1055
    %1057 = vrot.lane.b32.xlu0 %v1046, 112
    %v1058 = vpop.permute.xlu0 %1057
    %vm1059 = vcmp.lt.s32.totalorder %v880, 112
    %v1060 = vsel %vm1059, %v1056, %v1058
    %v1061 = vsel %vm1059, %v1054, %v1056
    %v1062 = vsel %vm1059, %v1052, %v1054
    %v1063 = vsel %vm1059, %v1058, %v1052
    %v1064 = vmul.f32 %v1062, %v152
    %v1065 = vmul.f32 %v1061, %v156
    %v1066 = vmul.f32 %v1060, %v160
    %v1067 = vmul.f32 %v1063, %v164
    %v1068 = vadd.f32 %v1035, %v1064
    %v1069 = vadd.f32 %v1036, %v1065
    %v1070 = vadd.f32 %v1037, %v1066
    %v1071 = vadd.f32 %v1038, %v1067
    %1072 = vrot.lane.b32.xlu0 %v767, 111
    %v1073 = vpop.permute.xlu0 %1072
    %1074 = vrot.lane.b32.xlu0 %v769, 111
    %v1075 = vpop.permute.xlu0 %1074
    %1076 = vrot.lane.b32.xlu0 %v862, 111
    %v1077 = vpop.permute.xlu0 %1076
    %1078 = vrot.lane.b32.xlu0 %v864, 111
    %v1079 = vpop.permute.xlu0 %1078
    %vm1080 = vcmp.lt.s32.totalorder %v880, 111
    %v1081 = vsel %vm1080, %v1077, %v1079
    %v1082 = vsel %vm1080, %v1075, %v1077
    %v1083 = vsel %vm1080, %v1073, %v1075
    %v1084 = vsel %vm1080, %v1079, %v1073
    %v1085 = vmul.f32 %v1083, %v168
    %v1086 = vmul.f32 %v1082, %v172
    %v1087 = vmul.f32 %v1081, %v176
    %v1088 = vmul.f32 %v1084, %v180
    %v1089 = vadd.f32 %v1068, %v1085
    %v1090 = vadd.f32 %v1069, %v1086
    %v1091 = vadd.f32 %v1070, %v1087
    %v1092 = vadd.f32 %v1071, %v1088
    %v1093 = vmax.f32 %v1089, 0.0
    %v1094 = vmax.f32 %v1090, 0.0
    %v1095 = vmax.f32 %v1091, 0.0
    %v1096 = vmax.f32 %v1092, 0.0
    %1097 = vrot.lane.b32.xlu0 %v1093, 1
    %v1098 = vpop.permute.xlu0 %1097
    %1099 = vrot.lane.b32.xlu0 %v1094, 1
    %v1100 = vpop.permute.xlu0 %1099
    %1101 = vrot.lane.b32.xlu0 %v1095, 1
    %v1102 = vpop.permute.xlu0 %1101
    %1103 = vrot.lane.b32.xlu0 %v1096, 1
    %v1104 = vpop.permute.xlu0 %1103
    %v1105 = vsel %vm968, %v1102, %v1104
    %v1106 = vsel %vm968, %v1100, %v1102
    %v1107 = vsel %vm968, %v1098, %v1100
    %v1108 = vsel %vm968, %v1104, %v1098
    %v1109 = vmul.f32 %v1108, %v104
    %v1110 = vmul.f32 %v1107, %v108
    %v1111 = vmul.f32 %v1106, %v112
    %v1112 = vmul.f32 %v1105, %v116
    %v1113 = vadd.f32 %v1093, %v1109
    %v1114 = vadd.f32 %v1094, %v1110
    %v1115 = vadd.f32 %v1095, %v1111
    %v1116 = vadd.f32 %v1096, %v1112
    %1117 = vrot.lane.b32.xlu0 %v1093, 127
    %v1118 = vpop.permute.xlu0 %1117
    %1119 = vrot.lane.b32.xlu0 %v1094, 127
    %v1120 = vpop.permute.xlu0 %1119
    %1121 = vrot.lane.b32.xlu0 %v1095, 127
    %v1122 = vpop.permute.xlu0 %1121
    %1123 = vrot.lane.b32.xlu0 %v1096, 127
    %v1124 = vpop.permute.xlu0 %1123
    %v1125 = vsel %vm1005, %v1122, %v1124
    %v1126 = vsel %vm1005, %v1120, %v1122
    %v1127 = vsel %vm1005, %v1118, %v1120
    %v1128 = vsel %vm1005, %v1124, %v1118
    %v1129 = vmul.f32 %v1127, %v120
    %v1130 = vmul.f32 %v1126, %v124
    %v1131 = vmul.f32 %v1125, %v128
    %v1132 = vmul.f32 %v1128, %v132
    %v1133 = vadd.f32 %v1113, %v1129
    %v1134 = vadd.f32 %v1114, %v1130
    %v1135 = vadd.f32 %v1115, %v1131
    %v1136 = vadd.f32 %v1116, %v1132
    %1137 = vrot.lane.b32.xlu0 %v1133, 16
    %v1138 = vpop.permute.xlu0 %1137
    %1139 = vrot.lane.b32.xlu0 %v1134, 16
    %v1140 = vpop.permute.xlu0 %1139
    %1141 = vrot.lane.b32.xlu0 %v1135, 16
    %v1142 = vpop.permute.xlu0 %1141
    %1143 = vrot.lane.b32.xlu0 %v1136, 16
    %v1144 = vpop.permute.xlu0 %1143
    %v1145 = vsel %vm914, %v1142, %v1144
    %v1146 = vsel %vm914, %v1140, %v1142
    %v1147 = vsel %vm914, %v1138, %v1140
    %v1148 = vsel %vm914, %v1144, %v1138
    %v1149 = vmul.f32 %v1148, %v72
    %v1150 = vmul.f32 %v1147, %v76
    %v1151 = vmul.f32 %v1146, %v80
    %v1152 = vmul.f32 %v1145, %v84
    %v1153 = vadd.f32 %v1133, %v1149
    %v1154 = vadd.f32 %v1134, %v1150
    %v1155 = vadd.f32 %v1135, %v1151
    %v1156 = vadd.f32 %v1136, %v1152
    %1157 = vrot.lane.b32.xlu0 %v1133, 112
    %v1158 = vpop.permute.xlu0 %1157
    %1159 = vrot.lane.b32.xlu0 %v1134, 112
    %v1160 = vpop.permute.xlu0 %1159
    %1161 = vrot.lane.b32.xlu0 %v1135, 112
    %v1162 = vpop.permute.xlu0 %1161
    %1163 = vrot.lane.b32.xlu0 %v1136, 112
    %v1164 = vpop.permute.xlu0 %1163
    %v1165 = vsel %vm1059, %v1162, %v1164
    %v1166 = vsel %vm1059, %v1160, %v1162
    %v1167 = vsel %vm1059, %v1158, %v1160
    %v1168 = vsel %vm1059, %v1164, %v1158
    %v1169 = vmul.f32 %v1167, %v152
    %v1170 = vmul.f32 %v1166, %v156
    %v1171 = vmul.f32 %v1165, %v160
    %v1172 = vmul.f32 %v1168, %v164
    %v1173 = vadd.f32 %v1153, %v1169
    %v1174 = vadd.f32 %v1154, %v1170
    %v1175 = vadd.f32 %v1155, %v1171
    %v1176 = vadd.f32 %v1156, %v1172
    %1178 = vset.pattern.permute.xlu0 4
    %1179 = vperm.xlu0 %1178, %v49
    %v1180 = vpop.permute.xlu0 %1179
    %1183 = vset.pattern.permute.xlu0 4
    %1184 = vperm.xlu0 %1183, %v50
    %v1185 = vpop.permute.xlu0 %1184
    %1188 = vset.pattern.permute.xlu0 4
    %1189 = vperm.xlu0 %1188, %v51
    %v1190 = vpop.permute.xlu0 %1189
    %1193 = vset.pattern.permute.xlu0 4
    %1194 = vperm.xlu0 %1193, %v52
    %v1195 = vpop.permute.xlu0 %1194
    %vm1197 = vcmask 31744
    %v1198 = vsel %vm1197, %v49, 0
    %v1200 = vsel %vm1197, %v50, 0
    %v1202 = vsel %vm1197, %v51, 0
    %v1204 = vsel %vm1197, %v52, 0
    %v1207 = vsel %vm638, %v1173, 0
    %v1210 = vsel %vm638, %v1174, 0
    %v1213 = vsel %vm638, %v1175, 0
    %v1216 = vsel %vm638, %v1176, 0
    %1218 = vmatprep.subr.mxu0 %v1210
    %1219 = vmatpush1.msra.mxu0 %v1207
    %1220 = vmatprep.subr.mxu0 0.0
    %1221 = vmatpush1.msra.mxu0 0.0
    %1222 = vmatprep.subr.mxu0 0.0
    %1223 = vmatpush1.msra.mxu0 0.0
    %1224 = vmatprep.subr.mxu0 0.0
    %1225 = vmatpush1.msra.mxu0 0.0
    %1226 = vmatprep.subr.mxu0 0.0
    %1227 = vmatpush1.msra.mxu0 0.0
    %1228 = vmatprep.subr.mxu0 0.0
    %1229 = vmatpush1.msra.mxu0 0.0
    %1230 = vmatprep.subr.mxu0 0.0
    %1231 = vmatpush1.msra.mxu0 0.0
    %1232 = vmatprep.subr.mxu0 0.0
    %1233 = vmatpush1.msra.mxu0 0.0
    %1234 = vmatprep.subr.mxu0 0.0
    %1235 = vmatpush1.msra.mxu0 0.0
    %1236 = vmatprep.subr.mxu0 0.0
    %1237 = vmatpush1.msra.mxu0 0.0
    %1238 = vmatprep.subr.mxu0 0.0
    %1239 = vmatpush1.msra.mxu0 0.0
    %1240 = vmatprep.subr.mxu0 0.0
    %1241 = vmatpush1.msra.mxu0 0.0
    %1242 = vmatprep.subr.mxu0 0.0
    %1243 = vmatpush1.msra.mxu0 0.0
    %1244 = vmatprep.subr.mxu0 0.0
    %1245 = vmatpush1.msra.mxu0 0.0
    %1246 = vmatprep.subr.mxu0 0.0
    %1247 = vmatpush1.msra.mxu0 0.0
    %1248 = vmatprep.subr.mxu0 0.0
    %1249 = vmatpush1.msra.mxu0 0.0
    %1250 = vmatprep.subr.mxu0 0.0
    %1251 = vmatpush1.msra.mxu0 0.0
    %1252 = vmatprep.subr.mxu0 0.0
    %1253 = vmatpush1.msra.mxu0 0.0
    %1254 = vmatprep.subr.mxu0 0.0
    %1255 = vmatpush1.msra.mxu0 0.0
    %1256 = vmatprep.subr.mxu0 0.0
    %1257 = vmatpush1.msra.mxu0 0.0
    %1258 = vmatprep.subr.mxu0 0.0
    %1259 = vmatpush1.msra.mxu0 0.0
    %1260 = vmatprep.subr.mxu0 0.0
    %1261 = vmatpush1.msra.mxu0 0.0
    %1262 = vmatprep.subr.mxu0 0.0
    %1263 = vmatpush1.msra.mxu0 0.0
    %1264 = vmatprep.subr.mxu0 0.0
    %1265 = vmatpush1.msra.mxu0 0.0
    %1266 = vmatprep.subr.mxu0 0.0
    %1267 = vmatpush1.msra.mxu0 0.0
    %1268 = vmatprep.subr.mxu0 0.0
    %1269 = vmatpush1.msra.mxu0 0.0
    %1270 = vmatprep.subr.mxu0 0.0
    %1271 = vmatpush1.msra.mxu0 0.0
    %1272 = vmatprep.subr.mxu0 0.0
    %1273 = vmatpush1.msra.mxu0 0.0
    %1274 = vmatprep.subr.mxu0 0.0
    %1275 = vmatpush1.msra.mxu0 0.0
    %1276 = vmatprep.subr.mxu0 0.0
    %1277 = vmatpush1.msra.mxu0 0.0
    %1278 = vmatprep.subr.mxu0 0.0
    %1279 = vmatpush1.msra.mxu0 0.0
    %1280 = vmatprep.subr.mxu0 0.0
    %1281 = vmatpush1.msra.mxu0 0.0
    %1282 = vmatprep.mubr.f32.mxu0 0.0
    %1283 = vmatmul.mubr.f32.gmra.mrb[0].mxu0 %v1198
    %v1284 = vpop.f32.mrb[0].mxu0
    %v1285 = vadd.f32 %v1180, %v1284
    %v1286 = vpop.f32.mrb[0].mxu0
    %v1287 = vadd.f32 %v1180, %v1286
    %1288 = vmatprep.mubr.f32.mxu0 0.0
    %1289 = vmatmul.mubr.f32.gmra.mrb[0].mxu0 %v1200
    %v1290 = vpop.f32.mrb[0].mxu0
    %v1291 = vadd.f32 %v1185, %v1290
    %v1292 = vpop.f32.mrb[0].mxu0
    %v1293 = vadd.f32 %v1185, %v1292
    %1294 = vmatprep.mubr.f32.mxu0 0.0
    %1295 = vmatmul.mubr.f32.gmra.mrb[0].mxu0 %v1202
    %v1296 = vpop.f32.mrb[0].mxu0
    %v1297 = vadd.f32 %v1190, %v1296
    %v1298 = vpop.f32.mrb[0].mxu0
    %v1299 = vadd.f32 %v1190, %v1298
    %1300 = vmatprep.mubr.f32.mxu0 0.0
    %1301 = vmatmul.mubr.f32.gmra.mrb[0].mxu0 %v1204
    %v1302 = vpop.f32.mrb[0].mxu0
    %v1303 = vadd.f32 %v1195, %v1302
    %v1304 = vpop.f32.mrb[0].mxu0
    %v1305 = vadd.f32 %v1195, %v1304
    %1306 = vdwg.mxu0
    %1307 = vmatprep.subr.mxu0 %v1216
    %1308 = vmatpush1.msra.mxu0 %v1213
    %1309 = vmatprep.subr.mxu0 0.0
    %1310 = vmatpush1.msra.mxu0 0.0
    %1311 = vmatprep.subr.mxu0 0.0
    %1312 = vmatpush1.msra.mxu0 0.0
    %1313 = vmatprep.subr.mxu0 0.0
    %1314 = vmatpush1.msra.mxu0 0.0
    %1315 = vmatprep.subr.mxu0 0.0
    %1316 = vmatpush1.msra.mxu0 0.0
    %1317 = vmatprep.subr.mxu0 0.0
    %1318 = vmatpush1.msra.mxu0 0.0
    %1319 = vmatprep.subr.mxu0 0.0
    %1320 = vmatpush1.msra.mxu0 0.0
    %1321 = vmatprep.subr.mxu0 0.0
    %1322 = vmatpush1.msra.mxu0 0.0
    %1323 = vmatprep.subr.mxu0 0.0
    %1324 = vmatpush1.msra.mxu0 0.0
    %1325 = vmatprep.subr.mxu0 0.0
    %1326 = vmatpush1.msra.mxu0 0.0
    %1327 = vmatprep.subr.mxu0 0.0
    %1328 = vmatpush1.msra.mxu0 0.0
    %1329 = vmatprep.subr.mxu0 0.0
    %1330 = vmatpush1.msra.mxu0 0.0
    %1331 = vmatprep.subr.mxu0 0.0
    %1332 = vmatpush1.msra.mxu0 0.0
    %1333 = vmatprep.subr.mxu0 0.0
    %1334 = vmatpush1.msra.mxu0 0.0
    %1335 = vmatprep.subr.mxu0 0.0
    %1336 = vmatpush1.msra.mxu0 0.0
    %1337 = vmatprep.subr.mxu0 0.0
    %1338 = vmatpush1.msra.mxu0 0.0
    %1339 = vmatprep.subr.mxu0 0.0
    %1340 = vmatpush1.msra.mxu0 0.0
    %1341 = vmatprep.subr.mxu0 0.0
    %1342 = vmatpush1.msra.mxu0 0.0
    %1343 = vmatprep.subr.mxu0 0.0
    %1344 = vmatpush1.msra.mxu0 0.0
    %1345 = vmatprep.subr.mxu0 0.0
    %1346 = vmatpush1.msra.mxu0 0.0
    %1347 = vmatprep.subr.mxu0 0.0
    %1348 = vmatpush1.msra.mxu0 0.0
    %1349 = vmatprep.subr.mxu0 0.0
    %1350 = vmatpush1.msra.mxu0 0.0
    %1351 = vmatprep.subr.mxu0 0.0
    %1352 = vmatpush1.msra.mxu0 0.0
    %1353 = vmatprep.subr.mxu0 0.0
    %1354 = vmatpush1.msra.mxu0 0.0
    %1355 = vmatprep.subr.mxu0 0.0
    %1356 = vmatpush1.msra.mxu0 0.0
    %1357 = vmatprep.subr.mxu0 0.0
    %1358 = vmatpush1.msra.mxu0 0.0
    %1359 = vmatprep.subr.mxu0 0.0
    %1360 = vmatpush1.msra.mxu0 0.0
    %1361 = vmatprep.subr.mxu0 0.0
    %1362 = vmatpush1.msra.mxu0 0.0
    %1363 = vmatprep.subr.mxu0 0.0
    %1364 = vmatpush1.msra.mxu0 0.0
    %1365 = vmatprep.subr.mxu0 0.0
    %1366 = vmatpush1.msra.mxu0 0.0
    %1367 = vmatprep.subr.mxu0 0.0
    %1368 = vmatpush1.msra.mxu0 0.0
    %1369 = vmatprep.subr.mxu0 0.0
    %1370 = vmatpush1.msra.mxu0 0.0
    %1371 = vmatprep.mubr.f32.mxu0 0.0
    %1372 = vmatmul.mubr.f32.gmra.mrb[0].mxu0 %v1198
    %v1373 = vpop.f32.mrb[0].mxu0
    %v1374 = vadd.f32 %v1180, %v1373
    %v1375 = vpop.f32.mrb[0].mxu0
    %v1376 = vadd.f32 %v1180, %v1375
    %1377 = vmatprep.mubr.f32.mxu0 0.0
    %1378 = vmatmul.mubr.f32.gmra.mrb[0].mxu0 %v1200
    %v1379 = vpop.f32.mrb[0].mxu0
    %v1380 = vadd.f32 %v1185, %v1379
    %v1381 = vpop.f32.mrb[0].mxu0
    %v1382 = vadd.f32 %v1185, %v1381
    %1383 = vmatprep.mubr.f32.mxu0 0.0
    %1384 = vmatmul.mubr.f32.gmra.mrb[0].mxu0 %v1202
    %v1385 = vpop.f32.mrb[0].mxu0
    %v1386 = vadd.f32 %v1190, %v1385
    %v1387 = vpop.f32.mrb[0].mxu0
    %v1388 = vadd.f32 %v1190, %v1387
    %1389 = vmatprep.mubr.f32.mxu0 0.0
    %1390 = vmatmul.mubr.f32.gmra.mrb[0].mxu0 %v1204
    %v1391 = vpop.f32.mrb[0].mxu0
    %v1392 = vadd.f32 %v1195, %v1391
    %v1393 = vpop.f32.mrb[0].mxu0
    %v1394 = vadd.f32 %v1195, %v1393
    %1395 = vdwg.mxu0
    %1396 = vst [vmem:[#allocation5] sm:$0xff] %v1285
    %1397 = vst [vmem:[#allocation5 + $0x8] sm:$0xff] %v1287
    %1398 = vst [vmem:[#allocation5 + $0x10] sm:$0xff] %v1374
    %1399 = vst [vmem:[#allocation5 + $0x18] sm:$0xff] %v1376
    %1400 = vst [vmem:[#allocation5 + $0x20] sm:$0xff] %v1291
    %1401 = vst [vmem:[#allocation5 + $0x28] sm:$0xff] %v1293
    %1402 = vst [vmem:[#allocation5 + $0x30] sm:$0xff] %v1380
    %1403 = vst [vmem:[#allocation5 + $0x38] sm:$0xff] %v1382
    %1404 = vst [vmem:[#allocation5 + $0x40] sm:$0xff] %v1297
    %1405 = vst [vmem:[#allocation5 + $0x48] sm:$0xff] %v1299
    %1406 = vst [vmem:[#allocation5 + $0x50] sm:$0xff] %v1386
    %1407 = vst [vmem:[#allocation5 + $0x58] sm:$0xff] %v1388
    %1408 = vst [vmem:[#allocation5 + $0x60] sm:$0xff] %v1303
    %1409 = vst [vmem:[#allocation5 + $0x68] sm:$0xff] %v1305
    %1410 = vst [vmem:[#allocation5 + $0x70] sm:$0xff] %v1392
    %1411 = vst [vmem:[#allocation5 + $0x78] sm:$0xff] %v1394
    // Predicated region
    $region26: #{tpu_custom_call.1} parent=1 // pred_check
      _
    $region27: #{tpu_custom_call.1} parent=1 // pred_check_branch
      %1413 = sbr.rel (0) target = $region29
    $region28: #{tpu_custom_call.1} parent=1 // pred_region
      %s1415 = ssub.s32 2048, 2048
      %1416 = vsyncadd [#allocation4], %s1415
      %s1417 = sshll.u32 [#allocation5], 4
      %s1418 = int_to_ptr.vmem [resolvable:$true] %s1417
      %1423 = dma.vmem_to_hbm [thread:$0]  %s1418, 2048, %s5, [#allocation4], 512, 512, 32
    $region29: #{tpu_custom_call.1} parent=1 // pred_fallthru
      _
    // Predicated region
    $region30: #{tpu_custom_call.1} parent=1 // pred_check
      _
    $region31: #{tpu_custom_call.1} parent=1 // pred_check_branch
      %1425 = sbr.rel (0) target = $region33
    $region32: #{tpu_custom_call.1} parent=1 // pred_region
      %1426 = dma.done [#allocation4], 2048
    $region33: #{tpu_custom_call.1} parent=1 // pred_fallthru
      _
    %1427 = vsyncpa [#allocation3], 1
    %1428 = vsyncpa [#allocation4], 1

</llo_original>
